<compile_context>
chip_gen: v6e
topology: v6e:2x2x1
jax: 0.10.0
libtpu: 0.0.40
codegen_flags: <defaults>
</compile_context>

<pallas_src>
import math

import numpy as np

import jax
import jax.numpy as jnp
from jax import lax
from jax.experimental import pallas as pl
from jax.experimental.pallas import tpu as pltpu


# ------------------------------- constants -----------------------------------
K1 = 16 * 11 * 11        # 1936  conv1 contraction size (Cin*kh*kw)
K1_PAD = 2048            # lane-aligned (multiple of 128)
P1 = 7 * 7               # 49    conv1 output positions
P1_PAD = 56              # sublane-aligned (multiple of 8)


def _sigmoid(z):
    # exp goes to the EUP; exact divide keeps us within 1e-5 of jax.nn.sigmoid.
    return 1.0 / (1.0 + jnp.exp(-z))


# ----------------------------- fused Pallas kernel ----------------------------
def _fused_conv_chain_kernel(p1_ref, w1_ref, b1_ref, g2t_ref, w2_ref, b2_ref,
                             g3t_ref, w3_ref, b3_ref, out_ref):
    f32 = jnp.float32
    dn_trans_b = (((1,), (1,)), ((), ()))   # contract last dim of both operands

    # ---- stage 1: conv1 (11x11 / s11 / p11) + sigmoid, channel-major ---------
    # (2, 2048) . (56, 2048)^T -> (2, 56)   [column p = oy*7 + ox]
    y1 = lax.dot_general(w1_ref[...], p1_ref[...], dn_trans_b,
                         preferred_element_type=f32)
    y1 = _sigmoid(y1 + b1_ref[...])                                   # (2, 56)

    # ---- stage 2: conv2 (1x1 / s3 / p1) + sigmoid -----------------------------
    # spatial gather (incl. zero padding) via constant selection matrix.
    p2 = jnp.dot(y1, g2t_ref[...], preferred_element_type=f32)        # (2, 9)
    y2 = _sigmoid(jnp.dot(w2_ref[...], p2, preferred_element_type=f32)
                  + b2_ref[...])                                      # (12, 9)

    # ---- stage 3: conv3 (3x3 / s1 / p1) + sigmoid -----------------------------
    # 9 kernel taps: gather + small matmul, accumulated (statically unrolled).
    acc = jnp.zeros(out_ref.shape, f32)                               # (24, 9)
    for k in range(9):
        gathered = jnp.dot(y2, g3t_ref[k], preferred_element_type=f32)      # (12, 9)
        acc = acc + jnp.dot(w3_ref[k], gathered, preferred_element_type=f32)
    out_ref[...] = _sigmoid(acc + b3_ref[...])                        # (24, 9)


# --------------------------- constant gather matrices -------------------------
def _build_g2t():
    """(P1_PAD, 9): maps conv1 output (7x7, channel-major cols) to conv2 patches.

    conv2 is 1x1 / stride 3 / pad 1 on a 7x7 map: output (oy, ox) reads input
    (3*oy-1, 3*ox-1) or zero padding.
    """
    g = np.zeros((P1_PAD, 9), np.float32)
    for oy in range(3):
        for ox in range(3):
            iy, ix = 3 * oy - 1, 3 * ox - 1
            if 0 <= iy < 7 and 0 <= ix < 7:
                g[iy * 7 + ix, oy * 3 + ox] = 1.0
    return jnp.asarray(g)


def _build_g3t():
    """(9, 9, 9): per-kernel-tap spatial gather for conv3 (3x3 / s1 / p1) on 3x3."""
    g = np.zeros((9, 9, 9), np.float32)
    for ki in range(3):
        for kj in range(3):
            k = ki * 3 + kj
            for oy in range(3):
                for ox in range(3):
                    iy, ix = oy + ki - 1, ox + kj - 1
                    if 0 <= iy < 3 and 0 <= ix < 3:
                        g[k, iy * 3 + ix, oy * 3 + ox] = 1.0
    return jnp.asarray(g)


# ------------------------------ parameter prep --------------------------------
def init_conv_params(key, cout, cin, kh, kw):
    kw_key, kb_key = jax.random.split(key)
    fan_in = cin * kh * kw
    bound = 1.0 / math.sqrt(fan_in)        # matches PyTorch default bound
    w = jax.random.uniform(kw_key, (cout, cin, kh, kw), jnp.float32, -bound, bound)
    b = jax.random.uniform(kb_key, (cout,), jnp.float32, -bound, bound)
    return w, b


def prepare_params(w1, b1, w2, b2, w3, b3):
    """One-time reshapes/pads so the per-forward path has zero weight glue ops."""
    w1p = jnp.pad(w1.reshape(2, K1), ((0, 0), (0, K1_PAD - K1)))      # (2, 2048)
    b1c = b1.reshape(2, 1)
    w2m = w2.reshape(12, 2)                                           # (Cout, Cin)
    b2c = b2.reshape(12, 1)
    w3k = w3.transpose(2, 3, 0, 1).reshape(9, 24, 12)                 # per-tap (24,12)
    b3c = b3.reshape(24, 1)
    return (w1p, b1c, _build_g2t(), w2m, b2c, _build_g3t(), w3k, b3c)


# ------------------------------ forward (Pallas) -------------------------------
def _space_to_depth_patches(x):
    """(1,16,64,64) -> (56, 2048) conv1 im2col, exploiting kernel==stride==11."""
    N, C, H, W = x.shape
    # Only padded rows/cols 0..76 are read (7 windows of 11); pad 11 top/left.
    xp = jnp.pad(x, ((0, 0), (0, 0), (11, 77 - 11 - H), (11, 77 - 11 - W)))
    p = (xp.reshape(N, C, 7, 11, 7, 11)
            .transpose(0, 2, 4, 1, 3, 5)          # (N, ho, wo, C, ki, kj)
            .reshape(P1, C * 121))                # row = oy*7 + ox, feat = (c,ki,kj)
    return jnp.pad(p, ((0, P1_PAD - P1), (0, K1_PAD - C * 121)))


@jax.jit
def model_forward(prepared, x1):
    (w1p, b1c, g2t, w2m, b2c, g3t, w3k, b3c) = prepared
    p1 = _space_to_depth_patches(x1)

    y3_cm = pl.pallas_call(
        _fused_conv_chain_kernel,
        out_shape=jax.ShapeDtypeStruct((24, 9), jnp.float32),
        in_specs=[pl.BlockSpec(memory_space=pltpu.MemorySpace.VMEM)
                  for _ in range(9)],
        out_specs=pl.BlockSpec(memory_space=pltpu.MemorySpace.VMEM),
    )(p1, w1p, b1c, g2t, w2m, b2c, g3t, w3k, b3c)

    # (24, 9) channel-major == NCHW (1, 24, 3, 3) flattened row-major.
    return y3_cm.reshape(1, 216)


# ----------------------------- pure-JAX reference ------------------------------
def ref_forward(params, x1):
    w1, b1, w2, b2, w3, b3 = params

    def conv_sig(x, w, b, s, p):
        y = lax.conv_general_dilated(
            x, w, (s, s), [(p, p), (p, p)],
            dimension_numbers=("NCHW", "OIHW", "NCHW"))
        return jax.nn.sigmoid(y + b[None, :, None, None])

    v2 = conv_sig(x1, w1, b1, 11, 11)     # (1, 2, 7, 7)
    v4 = conv_sig(v2, w2, b2, 3, 1)       # (1, 12, 3, 3)
    v6 = conv_sig(v4, w3, b3, 1, 1)       # (1, 24, 3, 3)
    return v6.reshape(1, -1)


if __name__ == "__main__":
    root = jax.random.PRNGKey(0)
    kx, k1, k2, k3 = jax.random.split(root, 4)

    x1 = jax.random.normal(kx, (1, 16, 64, 64), jnp.float32)

    w1, b1 = init_conv_params(k1, 2, 16, 11, 11)
    w2, b2 = init_conv_params(k2, 12, 2, 1, 1)
    w3, b3 = init_conv_params(k3, 24, 12, 3, 3)
    params = (w1, b1, w2, b2, w3, b3)
    prepared = prepare_params(*params)     # hoisted out of the forward path

    out = jax.block_until_ready(model_forward(prepared, x1))
    ref = jax.block_until_ready(ref_forward(params, x1))

    assert out.shape == (1, 216), out.shape
    assert jnp.allclose(out, ref, atol=1e-5, rtol=1e-5), float(jnp.max(jnp.abs(out - ref)))
    print("KERNEL_OK")
</pallas_src>

<mosaic_0001>
module attributes {stable_mosaic.version = 11 : i64} {
  func.func @_fused_conv_chain_kernel(%arg0: memref<56x2048xf32, #tpu.memory_space<vmem>>, %arg1: memref<2x2048xf32, #tpu.memory_space<vmem>>, %arg2: memref<2x1xf32, #tpu.memory_space<vmem>>, %arg3: memref<56x9xf32, #tpu.memory_space<vmem>>, %arg4: memref<12x2xf32, #tpu.memory_space<vmem>>, %arg5: memref<12x1xf32, #tpu.memory_space<vmem>>, %arg6: memref<9x9x9xf32, #tpu.memory_space<vmem>>, %arg7: memref<9x24x12xf32, #tpu.memory_space<vmem>>, %arg8: memref<24x1xf32, #tpu.memory_space<vmem>>, %arg9: memref<24x9xf32, #tpu.memory_space<vmem>>) attributes {dimension_semantics = [], scalar_prefetch = 0 : i64, scratch_operands = 0 : i64, tpu.core_type = #tpu.core_type<tc>} {
    %c0 = arith.constant 0 : index
    %c0_0 = arith.constant 0 : index
    %0 = vector.load %arg1[%c0, %c0_0] : memref<2x2048xf32, #tpu.memory_space<vmem>>, vector<2x2048xf32>
    %c0_1 = arith.constant 0 : index
    %c0_2 = arith.constant 0 : index
    %1 = vector.load %arg0[%c0_1, %c0_2] : memref<56x2048xf32, #tpu.memory_space<vmem>>, vector<56x2048xf32>
    %cst = arith.constant dense<0.000000e+00> : vector<2x56xf32>
    %2 = tpu.matmul %0, %1, %cst {dimension_numbers = #tpu.dot_dimension_numbers<[1], [1], [0], [0], [0, 0, 1, 0], [], []>} : vector<2x2048xf32>, vector<56x2048xf32>, vector<2x56xf32> -> vector<2x56xf32>
    %c0_3 = arith.constant 0 : index
    %c0_4 = arith.constant 0 : index
    %3 = vector.load %arg2[%c0_3, %c0_4] : memref<2x1xf32, #tpu.memory_space<vmem>>, vector<2x1xf32>
    %4 = vector.broadcast %3 : vector<2x1xf32> to vector<2x56xf32>
    %5 = arith.addf %2, %4 : vector<2x56xf32>
    %cst_5 = arith.constant 0.000000e+00 : f32
    %6 = vector.broadcast %cst_5 : f32 to vector<2x56xf32>
    %7 = arith.subf %6, %5 : vector<2x56xf32>
    %8 = math.exp %7 : vector<2x56xf32>
    %cst_6 = arith.constant 1.000000e+00 : f32
    %9 = vector.broadcast %cst_6 : f32 to vector<2x56xf32>
    %10 = arith.addf %9, %8 : vector<2x56xf32>
    %cst_7 = arith.constant 1.000000e+00 : f32
    %11 = vector.broadcast %cst_7 : f32 to vector<2x56xf32>
    %12 = arith.divf %11, %10 : vector<2x56xf32>
    %c0_8 = arith.constant 0 : index
    %c0_9 = arith.constant 0 : index
    %13 = vector.load %arg3[%c0_8, %c0_9] : memref<56x9xf32, #tpu.memory_space<vmem>>, vector<56x9xf32>
    %cst_10 = arith.constant dense<0.000000e+00> : vector<2x9xf32>
    %14 = tpu.matmul %12, %13, %cst_10 {dimension_numbers = #tpu.dot_dimension_numbers<[1], [0], [0], [1], [0, 0, 1, 1], [], []>} : vector<2x56xf32>, vector<56x9xf32>, vector<2x9xf32> -> vector<2x9xf32>
    %c0_11 = arith.constant 0 : index
    %c0_12 = arith.constant 0 : index
    %15 = vector.load %arg4[%c0_11, %c0_12] : memref<12x2xf32, #tpu.memory_space<vmem>>, vector<12x2xf32>
    %cst_13 = arith.constant dense<0.000000e+00> : vector<12x9xf32>
    %16 = tpu.matmul %15, %14, %cst_13 {dimension_numbers = #tpu.dot_dimension_numbers<[1], [0], [0], [1], [0, 0, 1, 1], [], []>} : vector<12x2xf32>, vector<2x9xf32>, vector<12x9xf32> -> vector<12x9xf32>
    %c0_14 = arith.constant 0 : index
    %c0_15 = arith.constant 0 : index
    %17 = vector.load %arg5[%c0_14, %c0_15] : memref<12x1xf32, #tpu.memory_space<vmem>>, vector<12x1xf32>
    %18 = vector.broadcast %17 : vector<12x1xf32> to vector<12x9xf32>
    %19 = arith.addf %16, %18 : vector<12x9xf32>
    %cst_16 = arith.constant 0.000000e+00 : f32
    %20 = vector.broadcast %cst_16 : f32 to vector<12x9xf32>
    %21 = arith.subf %20, %19 : vector<12x9xf32>
    %22 = math.exp %21 : vector<12x9xf32>
    %cst_17 = arith.constant 1.000000e+00 : f32
    %23 = vector.broadcast %cst_17 : f32 to vector<12x9xf32>
    %24 = arith.addf %23, %22 : vector<12x9xf32>
    %cst_18 = arith.constant 1.000000e+00 : f32
    %25 = vector.broadcast %cst_18 : f32 to vector<12x9xf32>
    %26 = arith.divf %25, %24 : vector<12x9xf32>
    %cst_19 = arith.constant 0.000000e+00 : f32
    %27 = vector.broadcast %cst_19 : f32 to vector<24x9xf32>
    %c0_20 = arith.constant 0 : index
    %c0_21 = arith.constant 0 : index
    %c0_22 = arith.constant 0 : index
    %28 = vector.load %arg6[%c0_20, %c0_21, %c0_22] : memref<9x9x9xf32, #tpu.memory_space<vmem>>, vector<1x9x9xf32>
    %29 = vector.shape_cast %28 : vector<1x9x9xf32> to vector<9x9xf32>
    %cst_23 = arith.constant dense<0.000000e+00> : vector<12x9xf32>
    %30 = tpu.matmul %26, %29, %cst_23 {dimension_numbers = #tpu.dot_dimension_numbers<[1], [0], [0], [1], [0, 0, 1, 1], [], []>} : vector<12x9xf32>, vector<9x9xf32>, vector<12x9xf32> -> vector<12x9xf32>
    %c0_24 = arith.constant 0 : index
    %c0_25 = arith.constant 0 : index
    %c0_26 = arith.constant 0 : index
    %31 = vector.load %arg7[%c0_24, %c0_25, %c0_26] : memref<9x24x12xf32, #tpu.memory_space<vmem>>, vector<1x24x12xf32>
    %32 = vector.shape_cast %31 : vector<1x24x12xf32> to vector<24x12xf32>
    %cst_27 = arith.constant dense<0.000000e+00> : vector<24x9xf32>
    %33 = tpu.matmul %32, %30, %cst_27 {dimension_numbers = #tpu.dot_dimension_numbers<[1], [0], [0], [1], [0, 0, 1, 1], [], []>} : vector<24x12xf32>, vector<12x9xf32>, vector<24x9xf32> -> vector<24x9xf32>
    %34 = arith.addf %27, %33 : vector<24x9xf32>
    %c1 = arith.constant 1 : index
    %c0_28 = arith.constant 0 : index
    %c0_29 = arith.constant 0 : index
    %35 = vector.load %arg6[%c1, %c0_28, %c0_29] : memref<9x9x9xf32, #tpu.memory_space<vmem>>, vector<1x9x9xf32>
    %36 = vector.shape_cast %35 : vector<1x9x9xf32> to vector<9x9xf32>
    %cst_30 = arith.constant dense<0.000000e+00> : vector<12x9xf32>
    %37 = tpu.matmul %26, %36, %cst_30 {dimension_numbers = #tpu.dot_dimension_numbers<[1], [0], [0], [1], [0, 0, 1, 1], [], []>} : vector<12x9xf32>, vector<9x9xf32>, vector<12x9xf32> -> vector<12x9xf32>
    %c1_31 = arith.constant 1 : index
    %c0_32 = arith.constant 0 : index
    %c0_33 = arith.constant 0 : index
    %38 = vector.load %arg7[%c1_31, %c0_32, %c0_33] : memref<9x24x12xf32, #tpu.memory_space<vmem>>, vector<1x24x12xf32>
    %39 = vector.shape_cast %38 : vector<1x24x12xf32> to vector<24x12xf32>
    %cst_34 = arith.constant dense<0.000000e+00> : vector<24x9xf32>
    %40 = tpu.matmul %39, %37, %cst_34 {dimension_numbers = #tpu.dot_dimension_numbers<[1], [0], [0], [1], [0, 0, 1, 1], [], []>} : vector<24x12xf32>, vector<12x9xf32>, vector<24x9xf32> -> vector<24x9xf32>
    %41 = arith.addf %34, %40 : vector<24x9xf32>
    %c2 = arith.constant 2 : index
    %c0_35 = arith.constant 0 : index
    %c0_36 = arith.constant 0 : index
    %42 = vector.load %arg6[%c2, %c0_35, %c0_36] : memref<9x9x9xf32, #tpu.memory_space<vmem>>, vector<1x9x9xf32>
    %43 = vector.shape_cast %42 : vector<1x9x9xf32> to vector<9x9xf32>
    %cst_37 = arith.constant dense<0.000000e+00> : vector<12x9xf32>
    %44 = tpu.matmul %26, %43, %cst_37 {dimension_numbers = #tpu.dot_dimension_numbers<[1], [0], [0], [1], [0, 0, 1, 1], [], []>} : vector<12x9xf32>, vector<9x9xf32>, vector<12x9xf32> -> vector<12x9xf32>
    %c2_38 = arith.constant 2 : index
    %c0_39 = arith.constant 0 : index
    %c0_40 = arith.constant 0 : index
    %45 = vector.load %arg7[%c2_38, %c0_39, %c0_40] : memref<9x24x12xf32, #tpu.memory_space<vmem>>, vector<1x24x12xf32>
    %46 = vector.shape_cast %45 : vector<1x24x12xf32> to vector<24x12xf32>
    %cst_41 = arith.constant dense<0.000000e+00> : vector<24x9xf32>
    %47 = tpu.matmul %46, %44, %cst_41 {dimension_numbers = #tpu.dot_dimension_numbers<[1], [0], [0], [1], [0, 0, 1, 1], [], []>} : vector<24x12xf32>, vector<12x9xf32>, vector<24x9xf32> -> vector<24x9xf32>
    %48 = arith.addf %41, %47 : vector<24x9xf32>
    %c3 = arith.constant 3 : index
    %c0_42 = arith.constant 0 : index
    %c0_43 = arith.constant 0 : index
    %49 = vector.load %arg6[%c3, %c0_42, %c0_43] : memref<9x9x9xf32, #tpu.memory_space<vmem>>, vector<1x9x9xf32>
    %50 = vector.shape_cast %49 : vector<1x9x9xf32> to vector<9x9xf32>
    %cst_44 = arith.constant dense<0.000000e+00> : vector<12x9xf32>
    %51 = tpu.matmul %26, %50, %cst_44 {dimension_numbers = #tpu.dot_dimension_numbers<[1], [0], [0], [1], [0, 0, 1, 1], [], []>} : vector<12x9xf32>, vector<9x9xf32>, vector<12x9xf32> -> vector<12x9xf32>
    %c3_45 = arith.constant 3 : index
    %c0_46 = arith.constant 0 : index
    %c0_47 = arith.constant 0 : index
    %52 = vector.load %arg7[%c3_45, %c0_46, %c0_47] : memref<9x24x12xf32, #tpu.memory_space<vmem>>, vector<1x24x12xf32>
    %53 = vector.shape_cast %52 : vector<1x24x12xf32> to vector<24x12xf32>
    %cst_48 = arith.constant dense<0.000000e+00> : vector<24x9xf32>
    %54 = tpu.matmul %53, %51, %cst_48 {dimension_numbers = #tpu.dot_dimension_numbers<[1], [0], [0], [1], [0, 0, 1, 1], [], []>} : vector<24x12xf32>, vector<12x9xf32>, vector<24x9xf32> -> vector<24x9xf32>
    %55 = arith.addf %48, %54 : vector<24x9xf32>
    %c4 = arith.constant 4 : index
    %c0_49 = arith.constant 0 : index
    %c0_50 = arith.constant 0 : index
    %56 = vector.load %arg6[%c4, %c0_49, %c0_50] : memref<9x9x9xf32, #tpu.memory_space<vmem>>, vector<1x9x9xf32>
    %57 = vector.shape_cast %56 : vector<1x9x9xf32> to vector<9x9xf32>
    %cst_51 = arith.constant dense<0.000000e+00> : vector<12x9xf32>
    %58 = tpu.matmul %26, %57, %cst_51 {dimension_numbers = #tpu.dot_dimension_numbers<[1], [0], [0], [1], [0, 0, 1, 1], [], []>} : vector<12x9xf32>, vector<9x9xf32>, vector<12x9xf32> -> vector<12x9xf32>
    %c4_52 = arith.constant 4 : index
    %c0_53 = arith.constant 0 : index
    %c0_54 = arith.constant 0 : index
    %59 = vector.load %arg7[%c4_52, %c0_53, %c0_54] : memref<9x24x12xf32, #tpu.memory_space<vmem>>, vector<1x24x12xf32>
    %60 = vector.shape_cast %59 : vector<1x24x12xf32> to vector<24x12xf32>
    %cst_55 = arith.constant dense<0.000000e+00> : vector<24x9xf32>
    %61 = tpu.matmul %60, %58, %cst_55 {dimension_numbers = #tpu.dot_dimension_numbers<[1], [0], [0], [1], [0, 0, 1, 1], [], []>} : vector<24x12xf32>, vector<12x9xf32>, vector<24x9xf32> -> vector<24x9xf32>
    %62 = arith.addf %55, %61 : vector<24x9xf32>
    %c5 = arith.constant 5 : index
    %c0_56 = arith.constant 0 : index
    %c0_57 = arith.constant 0 : index
    %63 = vector.load %arg6[%c5, %c0_56, %c0_57] : memref<9x9x9xf32, #tpu.memory_space<vmem>>, vector<1x9x9xf32>
    %64 = vector.shape_cast %63 : vector<1x9x9xf32> to vector<9x9xf32>
    %cst_58 = arith.constant dense<0.000000e+00> : vector<12x9xf32>
    %65 = tpu.matmul %26, %64, %cst_58 {dimension_numbers = #tpu.dot_dimension_numbers<[1], [0], [0], [1], [0, 0, 1, 1], [], []>} : vector<12x9xf32>, vector<9x9xf32>, vector<12x9xf32> -> vector<12x9xf32>
    %c5_59 = arith.constant 5 : index
    %c0_60 = arith.constant 0 : index
    %c0_61 = arith.constant 0 : index
    %66 = vector.load %arg7[%c5_59, %c0_60, %c0_61] : memref<9x24x12xf32, #tpu.memory_space<vmem>>, vector<1x24x12xf32>
    %67 = vector.shape_cast %66 : vector<1x24x12xf32> to vector<24x12xf32>
    %cst_62 = arith.constant dense<0.000000e+00> : vector<24x9xf32>
    %68 = tpu.matmul %67, %65, %cst_62 {dimension_numbers = #tpu.dot_dimension_numbers<[1], [0], [0], [1], [0, 0, 1, 1], [], []>} : vector<24x12xf32>, vector<12x9xf32>, vector<24x9xf32> -> vector<24x9xf32>
    %69 = arith.addf %62, %68 : vector<24x9xf32>
    %c6 = arith.constant 6 : index
    %c0_63 = arith.constant 0 : index
    %c0_64 = arith.constant 0 : index
    %70 = vector.load %arg6[%c6, %c0_63, %c0_64] : memref<9x9x9xf32, #tpu.memory_space<vmem>>, vector<1x9x9xf32>
    %71 = vector.shape_cast %70 : vector<1x9x9xf32> to vector<9x9xf32>
    %cst_65 = arith.constant dense<0.000000e+00> : vector<12x9xf32>
    %72 = tpu.matmul %26, %71, %cst_65 {dimension_numbers = #tpu.dot_dimension_numbers<[1], [0], [0], [1], [0, 0, 1, 1], [], []>} : vector<12x9xf32>, vector<9x9xf32>, vector<12x9xf32> -> vector<12x9xf32>
    %c6_66 = arith.constant 6 : index
    %c0_67 = arith.constant 0 : index
    %c0_68 = arith.constant 0 : index
    %73 = vector.load %arg7[%c6_66, %c0_67, %c0_68] : memref<9x24x12xf32, #tpu.memory_space<vmem>>, vector<1x24x12xf32>
    %74 = vector.shape_cast %73 : vector<1x24x12xf32> to vector<24x12xf32>
    %cst_69 = arith.constant dense<0.000000e+00> : vector<24x9xf32>
    %75 = tpu.matmul %74, %72, %cst_69 {dimension_numbers = #tpu.dot_dimension_numbers<[1], [0], [0], [1], [0, 0, 1, 1], [], []>} : vector<24x12xf32>, vector<12x9xf32>, vector<24x9xf32> -> vector<24x9xf32>
    %76 = arith.addf %69, %75 : vector<24x9xf32>
    %c7 = arith.constant 7 : index
    %c0_70 = arith.constant 0 : index
    %c0_71 = arith.constant 0 : index
    %77 = vector.load %arg6[%c7, %c0_70, %c0_71] : memref<9x9x9xf32, #tpu.memory_space<vmem>>, vector<1x9x9xf32>
    %78 = vector.shape_cast %77 : vector<1x9x9xf32> to vector<9x9xf32>
    %cst_72 = arith.constant dense<0.000000e+00> : vector<12x9xf32>
    %79 = tpu.matmul %26, %78, %cst_72 {dimension_numbers = #tpu.dot_dimension_numbers<[1], [0], [0], [1], [0, 0, 1, 1], [], []>} : vector<12x9xf32>, vector<9x9xf32>, vector<12x9xf32> -> vector<12x9xf32>
    %c7_73 = arith.constant 7 : index
    %c0_74 = arith.constant 0 : index
    %c0_75 = arith.constant 0 : index
    %80 = vector.load %arg7[%c7_73, %c0_74, %c0_75] : memref<9x24x12xf32, #tpu.memory_space<vmem>>, vector<1x24x12xf32>
    %81 = vector.shape_cast %80 : vector<1x24x12xf32> to vector<24x12xf32>
    %cst_76 = arith.constant dense<0.000000e+00> : vector<24x9xf32>
    %82 = tpu.matmul %81, %79, %cst_76 {dimension_numbers = #tpu.dot_dimension_numbers<[1], [0], [0], [1], [0, 0, 1, 1], [], []>} : vector<24x12xf32>, vector<12x9xf32>, vector<24x9xf32> -> vector<24x9xf32>
    %83 = arith.addf %76, %82 : vector<24x9xf32>
    %c8 = arith.constant 8 : index
    %c0_77 = arith.constant 0 : index
    %c0_78 = arith.constant 0 : index
    %84 = vector.load %arg6[%c8, %c0_77, %c0_78] : memref<9x9x9xf32, #tpu.memory_space<vmem>>, vector<1x9x9xf32>
    %85 = vector.shape_cast %84 : vector<1x9x9xf32> to vector<9x9xf32>
    %cst_79 = arith.constant dense<0.000000e+00> : vector<12x9xf32>
    %86 = tpu.matmul %26, %85, %cst_79 {dimension_numbers = #tpu.dot_dimension_numbers<[1], [0], [0], [1], [0, 0, 1, 1], [], []>} : vector<12x9xf32>, vector<9x9xf32>, vector<12x9xf32> -> vector<12x9xf32>
    %c8_80 = arith.constant 8 : index
    %c0_81 = arith.constant 0 : index
    %c0_82 = arith.constant 0 : index
    %87 = vector.load %arg7[%c8_80, %c0_81, %c0_82] : memref<9x24x12xf32, #tpu.memory_space<vmem>>, vector<1x24x12xf32>
    %88 = vector.shape_cast %87 : vector<1x24x12xf32> to vector<24x12xf32>
    %cst_83 = arith.constant dense<0.000000e+00> : vector<24x9xf32>
    %89 = tpu.matmul %88, %86, %cst_83 {dimension_numbers = #tpu.dot_dimension_numbers<[1], [0], [0], [1], [0, 0, 1, 1], [], []>} : vector<24x12xf32>, vector<12x9xf32>, vector<24x9xf32> -> vector<24x9xf32>
    %90 = arith.addf %83, %89 : vector<24x9xf32>
    %c0_84 = arith.constant 0 : index
    %c0_85 = arith.constant 0 : index
    %91 = vector.load %arg8[%c0_84, %c0_85] : memref<24x1xf32, #tpu.memory_space<vmem>>, vector<24x1xf32>
    %92 = vector.broadcast %91 : vector<24x1xf32> to vector<24x9xf32>
    %93 = arith.addf %90, %92 : vector<24x9xf32>
    %cst_86 = arith.constant 0.000000e+00 : f32
    %94 = vector.broadcast %cst_86 : f32 to vector<24x9xf32>
    %95 = arith.subf %94, %93 : vector<24x9xf32>
    %96 = math.exp %95 : vector<24x9xf32>
    %cst_87 = arith.constant 1.000000e+00 : f32
    %97 = vector.broadcast %cst_87 : f32 to vector<24x9xf32>
    %98 = arith.addf %97, %96 : vector<24x9xf32>
    %cst_88 = arith.constant 1.000000e+00 : f32
    %99 = vector.broadcast %cst_88 : f32 to vector<24x9xf32>
    %100 = arith.divf %99, %98 : vector<24x9xf32>
    %c0_89 = arith.constant 0 : index
    %c0_90 = arith.constant 0 : index
    %101 = vector.load %arg9[%c0_89, %c0_90] : memref<24x9xf32, #tpu.memory_space<vmem>>, vector<24x9xf32>
    tpu.vector_store %arg9[%c0_89, %c0_90], %100 {strides = array<i32>} : memref<24x9xf32, #tpu.memory_space<vmem>>, vector<24x9xf32>,
    return
  }
}

</mosaic_0001>

<llo_original>
// kernel: model_forward.1
$region0: #{model_forward.1}
  #allocation0 [shape = 'u32[]', space=smem, size = 0x4, offset = 0x4, fixed_abs, tag = 'smem constant byte address 0x4 - core index']
  #allocation1 [shape = 'u32[144,128]{1,0:T(1,128)}', space=vmem, size = 0x12000, scoped, tag = 'internal scratch']
  %s0 = inlined_call_operand.vmem [shape: f32[56,2048], index: 0, kind: input, shape index: {}]
  %s1 = inlined_call_operand.vmem [shape: f32[2,2048], index: 1, kind: input, shape index: {}]
  %s2 = inlined_call_operand.vmem [shape: f32[2,1], index: 2, kind: input, shape index: {}]
  %s3 = inlined_call_operand.vmem [shape: f32[56,9], index: 3, kind: input, shape index: {}]
  %s4 = inlined_call_operand.vmem [shape: f32[12,2], index: 4, kind: input, shape index: {}]
  %s5 = inlined_call_operand.vmem [shape: f32[12,1], index: 5, kind: input, shape index: {}]
  %s6 = inlined_call_operand.vmem [shape: f32[9,9,9], index: 6, kind: input, shape index: {}]
  %s7 = inlined_call_operand.vmem [shape: f32[9,24,12], index: 7, kind: input, shape index: {}]
  %s8 = inlined_call_operand.vmem [shape: f32[24,1], index: 8, kind: input, shape index: {}]
  %s9 = inlined_call_operand.vmem [shape: f32[24,9], index: 9, kind: output, shape index: {}]
  %s10 = sld [smem:[#allocation0]]
  $region46: #{model_forward.1} parent=0
    _
  %s12 = ssub.s32 1, %s10
  %s13 = scalar_select 0, %s12, %s10
  // Predicated region
  $region2: #{model_forward.1} parent=0 // pred_check
    _
  $region3: #{model_forward.1} parent=0 // pred_check_branch
    %15 = sbr.rel (0) target = $region5
  $region4: #{model_forward.1} parent=0 // pred_region
    _
  $region5: #{model_forward.1} parent=0 // pred_fallthru
    _
  // Predicated region
  $region6: #{model_forward.1} parent=0 // pred_check
    _
  $region7: #{model_forward.1} parent=0 // pred_check_branch
    %17 = sbr.rel (0) target = $region9
  $region8: #{model_forward.1} parent=0 // pred_region
    _
  $region9: #{model_forward.1} parent=0 // pred_fallthru
    _
  // Predicated region
  $region10: #{model_forward.1} parent=0 // pred_check
    _
  $region11: #{model_forward.1} parent=0 // pred_check_branch
    %19 = sbr.rel (0) target = $region13
  $region12: #{model_forward.1} parent=0 // pred_region
    _
  $region13: #{model_forward.1} parent=0 // pred_fallthru
    _
  // Predicated region
  $region14: #{model_forward.1} parent=0 // pred_check
    _
  $region15: #{model_forward.1} parent=0 // pred_check_branch
    %21 = sbr.rel (0) target = $region17
  $region16: #{model_forward.1} parent=0 // pred_region
    _
  $region17: #{model_forward.1} parent=0 // pred_fallthru
    _
  // Predicated region
  $region18: #{model_forward.1} parent=0 // pred_check
    _
  $region19: #{model_forward.1} parent=0 // pred_check_branch
    %23 = sbr.rel (0) target = $region21
  $region20: #{model_forward.1} parent=0 // pred_region
    _
  $region21: #{model_forward.1} parent=0 // pred_fallthru
    _
  // Predicated region
  $region22: #{model_forward.1} parent=0 // pred_check
    _
  $region23: #{model_forward.1} parent=0 // pred_check_branch
    %25 = sbr.rel (0) target = $region25
  $region24: #{model_forward.1} parent=0 // pred_region
    _
  $region25: #{model_forward.1} parent=0 // pred_fallthru
    _
  // Predicated region
  $region26: #{model_forward.1} parent=0 // pred_check
    _
  $region27: #{model_forward.1} parent=0 // pred_check_branch
    %27 = sbr.rel (0) target = $region29
  $region28: #{model_forward.1} parent=0 // pred_region
    _
  $region29: #{model_forward.1} parent=0 // pred_fallthru
    _
  // Predicated region
  $region30: #{model_forward.1} parent=0 // pred_check
    _
  $region31: #{model_forward.1} parent=0 // pred_check_branch
    %29 = sbr.rel (0) target = $region33
  $region32: #{model_forward.1} parent=0 // pred_region
    _
  $region33: #{model_forward.1} parent=0 // pred_fallthru
    _
  // Predicated region
  $region34: #{model_forward.1} parent=0 // pred_check
    _
  $region35: #{model_forward.1} parent=0 // pred_check_branch
    %31 = sbr.rel (0) target = $region37
  $region36: #{model_forward.1} parent=0 // pred_region
    _
  $region37: #{model_forward.1} parent=0 // pred_fallthru
    _
  %v32 = vld [vmem:[%s1] sm:$0xff]
  %v33 = vld [vmem:[%s1 + $0x8] sm:$0xff]
  %v34 = vld [vmem:[%s1 + $0x10] sm:$0xff]
  %v35 = vld [vmem:[%s1 + $0x18] sm:$0xff]
  %v36 = vld [vmem:[%s0] sm:$0xff]
  %v37 = vld [vmem:[%s0 + $0x8] sm:$0xff]
  %v38 = vld [vmem:[%s0 + $0x10] sm:$0xff]
  %v39 = vld [vmem:[%s0 + $0x18] sm:$0xff]
  %v40 = vld [vmem:[%s0 + $0x20] sm:$0xff]
  %v41 = vld [vmem:[%s0 + $0x28] sm:$0xff]
  %v42 = vld [vmem:[%s0 + $0x30] sm:$0xff]
  %v43 = vld [vmem:[%s0 + $0x38] sm:$0xff]
  %v44 = vld [vmem:[%s0 + $0x40] sm:$0xff]
  %v45 = vld [vmem:[%s0 + $0x48] sm:$0xff]
  %v46 = vld [vmem:[%s0 + $0x50] sm:$0xff]
  %v47 = vld [vmem:[%s0 + $0x58] sm:$0xff]
  %v48 = vld [vmem:[%s0 + $0x60] sm:$0xff]
  %v49 = vld [vmem:[%s0 + $0x68] sm:$0xff]
  %v50 = vld [vmem:[%s0 + $0x70] sm:$0xff]
  %v51 = vld [vmem:[%s0 + $0x78] sm:$0xff]
  %v52 = vld [vmem:[%s0 + $0x80] sm:$0xff]
  %v53 = vld [vmem:[%s0 + $0x88] sm:$0xff]
  %v54 = vld [vmem:[%s0 + $0x90] sm:$0xff]
  %v55 = vld [vmem:[%s0 + $0x98] sm:$0xff]
  %v56 = vld [vmem:[%s0 + $0xa0] sm:$0xff]
  %v57 = vld [vmem:[%s0 + $0xa8] sm:$0xff]
  %v58 = vld [vmem:[%s0 + $0xb0] sm:$0xff]
  %v59 = vld [vmem:[%s0 + $0xb8] sm:$0xff]
  %v60 = vld [vmem:[%s0 + $0xc0] sm:$0xff]
  %v61 = vld [vmem:[%s0 + $0xc8] sm:$0xff]
  %v62 = vld [vmem:[%s0 + $0xd0] sm:$0xff]
  %v63 = vld [vmem:[%s0 + $0xd8] sm:$0xff]
  %v64 = vld [vmem:[%s0 + $0xe0] sm:$0xff]
  %v65 = vld [vmem:[%s0 + $0xe8] sm:$0xff]
  %v66 = vld [vmem:[%s0 + $0xf0] sm:$0xff]
  %v67 = vld [vmem:[%s0 + $0xf8] sm:$0xff]
  %v68 = vld [vmem:[%s0 + $0x100] sm:$0xff]
  %v69 = vld [vmem:[%s0 + $0x108] sm:$0xff]
  %v70 = vld [vmem:[%s0 + $0x110] sm:$0xff]
  %v71 = vld [vmem:[%s0 + $0x118] sm:$0xff]
  %v72 = vld [vmem:[%s0 + $0x120] sm:$0xff]
  %v73 = vld [vmem:[%s0 + $0x128] sm:$0xff]
  %v74 = vld [vmem:[%s0 + $0x130] sm:$0xff]
  %v75 = vld [vmem:[%s0 + $0x138] sm:$0xff]
  %v76 = vld [vmem:[%s0 + $0x140] sm:$0xff]
  %v77 = vld [vmem:[%s0 + $0x148] sm:$0xff]
  %v78 = vld [vmem:[%s0 + $0x150] sm:$0xff]
  %v79 = vld [vmem:[%s0 + $0x158] sm:$0xff]
  %v80 = vld [vmem:[%s0 + $0x160] sm:$0xff]
  %v81 = vld [vmem:[%s0 + $0x168] sm:$0xff]
  %v82 = vld [vmem:[%s0 + $0x170] sm:$0xff]
  %v83 = vld [vmem:[%s0 + $0x178] sm:$0xff]
  %v84 = vld [vmem:[%s0 + $0x180] sm:$0xff]
  %v85 = vld [vmem:[%s0 + $0x188] sm:$0xff]
  %v86 = vld [vmem:[%s0 + $0x190] sm:$0xff]
  %v87 = vld [vmem:[%s0 + $0x198] sm:$0xff]
  %v88 = vld [vmem:[%s0 + $0x1a0] sm:$0xff]
  %v89 = vld [vmem:[%s0 + $0x1a8] sm:$0xff]
  %v90 = vld [vmem:[%s0 + $0x1b0] sm:$0xff]
  %v91 = vld [vmem:[%s0 + $0x1b8] sm:$0xff]
  %v92 = vld [vmem:[%s0 + $0x1c0] sm:$0xff]
  %v93 = vld [vmem:[%s0 + $0x1c8] sm:$0xff]
  %v94 = vld [vmem:[%s0 + $0x1d0] sm:$0xff]
  %v95 = vld [vmem:[%s0 + $0x1d8] sm:$0xff]
  %v96 = vld [vmem:[%s0 + $0x1e0] sm:$0xff]
  %v97 = vld [vmem:[%s0 + $0x1e8] sm:$0xff]
  %v98 = vld [vmem:[%s0 + $0x1f0] sm:$0xff]
  %v99 = vld [vmem:[%s0 + $0x1f8] sm:$0xff]
  %v100 = vld [vmem:[%s0 + $0x200] sm:$0xff]
  %v101 = vld [vmem:[%s0 + $0x208] sm:$0xff]
  %v102 = vld [vmem:[%s0 + $0x210] sm:$0xff]
  %v103 = vld [vmem:[%s0 + $0x218] sm:$0xff]
  %v104 = vld [vmem:[%s0 + $0x220] sm:$0xff]
  %v105 = vld [vmem:[%s0 + $0x228] sm:$0xff]
  %v106 = vld [vmem:[%s0 + $0x230] sm:$0xff]
  %v107 = vld [vmem:[%s0 + $0x238] sm:$0xff]
  %v108 = vld [vmem:[%s0 + $0x240] sm:$0xff]
  %v109 = vld [vmem:[%s0 + $0x248] sm:$0xff]
  %v110 = vld [vmem:[%s0 + $0x250] sm:$0xff]
  %v111 = vld [vmem:[%s0 + $0x258] sm:$0xff]
  %v112 = vld [vmem:[%s0 + $0x260] sm:$0xff]
  %v113 = vld [vmem:[%s0 + $0x268] sm:$0xff]
  %v114 = vld [vmem:[%s0 + $0x270] sm:$0xff]
  %v115 = vld [vmem:[%s0 + $0x278] sm:$0xff]
  %v116 = vld [vmem:[%s0 + $0x280] sm:$0xff]
  %v117 = vld [vmem:[%s0 + $0x288] sm:$0xff]
  %v118 = vld [vmem:[%s0 + $0x290] sm:$0xff]
  %v119 = vld [vmem:[%s0 + $0x298] sm:$0xff]
  %v120 = vld [vmem:[%s0 + $0x2a0] sm:$0xff]
  %v121 = vld [vmem:[%s0 + $0x2a8] sm:$0xff]
  %v122 = vld [vmem:[%s0 + $0x2b0] sm:$0xff]
  %v123 = vld [vmem:[%s0 + $0x2b8] sm:$0xff]
  %v124 = vld [vmem:[%s0 + $0x2c0] sm:$0xff]
  %v125 = vld [vmem:[%s0 + $0x2c8] sm:$0xff]
  %v126 = vld [vmem:[%s0 + $0x2d0] sm:$0xff]
  %v127 = vld [vmem:[%s0 + $0x2d8] sm:$0xff]
  %v128 = vld [vmem:[%s0 + $0x2e0] sm:$0xff]
  %v129 = vld [vmem:[%s0 + $0x2e8] sm:$0xff]
  %v130 = vld [vmem:[%s0 + $0x2f0] sm:$0xff]
  %v131 = vld [vmem:[%s0 + $0x2f8] sm:$0xff]
  %v132 = vld [vmem:[%s0 + $0x300] sm:$0xff]
  %v133 = vld [vmem:[%s0 + $0x308] sm:$0xff]
  %v134 = vld [vmem:[%s0 + $0x310] sm:$0xff]
  %v135 = vld [vmem:[%s0 + $0x318] sm:$0xff]
  %v136 = vld [vmem:[%s0 + $0x320] sm:$0xff]
  %v137 = vld [vmem:[%s0 + $0x328] sm:$0xff]
  %v138 = vld [vmem:[%s0 + $0x330] sm:$0xff]
  %v139 = vld [vmem:[%s0 + $0x338] sm:$0xff]
  %v140 = vld [vmem:[%s0 + $0x340] sm:$0xff]
  %v141 = vld [vmem:[%s0 + $0x348] sm:$0xff]
  %v142 = vld [vmem:[%s0 + $0x350] sm:$0xff]
  %v143 = vld [vmem:[%s0 + $0x358] sm:$0xff]
  %v144 = vld [vmem:[%s0 + $0x360] sm:$0xff]
  %v145 = vld [vmem:[%s0 + $0x368] sm:$0xff]
  %v146 = vld [vmem:[%s0 + $0x370] sm:$0xff]
  %v147 = vld [vmem:[%s0 + $0x378] sm:$0xff]
  %v148 = vld [vmem:[%s2] sm:$0x3]
  %150 = vset.pattern.permute.xlu0 0
  %151 = vperm.xlu0 %150, %v148
  %v152 = vpop.permute.xlu0 %151
  %v158 = vcombine.high %v32, %v32
  %v160 = vunpack.c.l.s4 1983009808
  %v161 = vunpack.c.0.s8 %v160
  %v162 = vlaneseq
  %v163 = vshrl.u32 %v162, 7
  %v164 = vsub.s32 %v161, %v163
  %v165 = vrot.slane %v32, %v164
  %v167 = vunpack.c.l.s4 1983009808
  %v168 = vunpack.c.0.s8 %v167
  %v169 = vlaneseq
  %v170 = vshrl.u32 %v169, 7
  %v171 = vsub.s32 %v168, %v170
  %v172 = vrot.slane %v158, %v171
  %v173 = vcombine.high %v165, %v165
  %v174 = vcombine.high %v172, %v172
  %v175 = vcombine.high %v33, %v33
  %v177 = vunpack.c.l.s4 1983009808
  %v178 = vunpack.c.0.s8 %v177
  %v179 = vlaneseq
  %v180 = vshrl.u32 %v179, 7
  %v181 = vsub.s32 %v178, %v180
  %v182 = vrot.slane %v33, %v181
  %v184 = vunpack.c.l.s4 1983009808
  %v185 = vunpack.c.0.s8 %v184
  %v186 = vlaneseq
  %v187 = vshrl.u32 %v186, 7
  %v188 = vsub.s32 %v185, %v187
  %v189 = vrot.slane %v175, %v188
  %v190 = vcombine.high %v182, %v182
  %v191 = vcombine.high %v189, %v189
  %v192 = vcombine.high %v34, %v34
  %v194 = vunpack.c.l.s4 1983009808
  %v195 = vunpack.c.0.s8 %v194
  %v196 = vlaneseq
  %v197 = vshrl.u32 %v196, 7
  %v198 = vsub.s32 %v195, %v197
  %v199 = vrot.slane %v34, %v198
  %v201 = vunpack.c.l.s4 1983009808
  %v202 = vunpack.c.0.s8 %v201
  %v203 = vlaneseq
  %v204 = vshrl.u32 %v203, 7
  %v205 = vsub.s32 %v202, %v204
  %v206 = vrot.slane %v192, %v205
  %v207 = vcombine.high %v199, %v199
  %v208 = vcombine.high %v206, %v206
  %v209 = vcombine.high %v35, %v35
  %v211 = vunpack.c.l.s4 1983009808
  %v212 = vunpack.c.0.s8 %v211
  %v213 = vlaneseq
  %v214 = vshrl.u32 %v213, 7
  %v215 = vsub.s32 %v212, %v214
  %v216 = vrot.slane %v35, %v215
  %v218 = vunpack.c.l.s4 1983009808
  %v219 = vunpack.c.0.s8 %v218
  %v220 = vlaneseq
  %v221 = vshrl.u32 %v220, 7
  %v222 = vsub.s32 %v219, %v221
  %v223 = vrot.slane %v209, %v222
  %v224 = vcombine.high %v216, %v216
  %v225 = vcombine.high %v223, %v223
  %242 = vmatprep.subr.mxu0 0.0
  %243 = vmatpush1.xpose.msra.mxu0 0.0
  %244 = vmatprep.subr.mxu0 0.0
  %245 = vmatpush1.xpose.msra.mxu0 0.0
  %246 = vmatprep.subr.mxu0 0.0
  %247 = vmatpush1.xpose.msra.mxu0 0.0
  %248 = vmatprep.subr.mxu0 0.0
  %249 = vmatpush1.xpose.msra.mxu0 0.0
  %250 = vmatprep.subr.mxu0 0.0
  %251 = vmatpush1.xpose.msra.mxu0 0.0
  %252 = vmatprep.subr.mxu0 0.0
  %253 = vmatpush1.xpose.msra.mxu0 0.0
  %254 = vmatprep.subr.mxu0 0.0
  %255 = vmatpush1.xpose.msra.mxu0 0.0
  %256 = vmatprep.subr.mxu0 0.0
  %257 = vmatpush1.xpose.msra.mxu0 0.0
  %258 = vmatprep.subr.mxu0 0.0
  %259 = vmatpush1.xpose.msra.mxu0 0.0
  %260 = vmatprep.subr.mxu0 %v133
  %261 = vmatpush1.xpose.msra.mxu0 %v132
  %262 = vmatprep.subr.mxu0 %v117
  %263 = vmatpush1.xpose.msra.mxu0 %v116
  %264 = vmatprep.subr.mxu0 %v101
  %265 = vmatpush1.xpose.msra.mxu0 %v100
  %266 = vmatprep.subr.mxu0 %v85
  %267 = vmatpush1.xpose.msra.mxu0 %v84
  %268 = vmatprep.subr.mxu0 %v69
  %269 = vmatpush1.xpose.msra.mxu0 %v68
  %270 = vmatprep.subr.mxu0 %v53
  %271 = vmatpush1.xpose.msra.mxu0 %v52
  %272 = vmatprep.subr.mxu0 %v37
  %273 = vmatpush1.xpose.msra.mxu0 %v36
  %274 = vmatprep.subr.mxu0 0.0
  %275 = vmatpush2.xpose.msra.mxu0 0.0
  %276 = vmatprep.subr.mxu0 0.0
  %277 = vmatpush2.xpose.msra.mxu0 0.0
  %278 = vmatprep.subr.mxu0 0.0
  %279 = vmatpush2.xpose.msra.mxu0 0.0
  %280 = vmatprep.subr.mxu0 0.0
  %281 = vmatpush2.xpose.msra.mxu0 0.0
  %282 = vmatprep.subr.mxu0 0.0
  %283 = vmatpush2.xpose.msra.mxu0 0.0
  %284 = vmatprep.subr.mxu0 0.0
  %285 = vmatpush2.xpose.msra.mxu0 0.0
  %286 = vmatprep.subr.mxu0 0.0
  %287 = vmatpush2.xpose.msra.mxu0 0.0
  %288 = vmatprep.subr.mxu0 0.0
  %289 = vmatpush2.xpose.msra.mxu0 0.0
  %290 = vmatprep.subr.mxu0 0.0
  %291 = vmatpush2.xpose.msra.mxu0 0.0
  %292 = vmatprep.subr.mxu0 0.0
  %293 = vmatpush2.xpose.msra.mxu0 0.0
  %294 = vmatprep.subr.mxu0 0.0
  %295 = vmatpush2.xpose.msra.mxu0 0.0
  %296 = vmatprep.subr.mxu0 0.0
  %297 = vmatpush2.xpose.msra.mxu0 0.0
  %298 = vmatprep.subr.mxu0 0.0
  %299 = vmatpush2.xpose.msra.mxu0 0.0
  %300 = vmatprep.subr.mxu0 0.0
  %301 = vmatpush2.xpose.msra.mxu0 0.0
  %302 = vmatprep.subr.mxu0 0.0
  %303 = vmatpush2.xpose.msra.mxu0 0.0
  %304 = vmatprep.subr.mxu0 0.0
  %305 = vmatpush2.xpose.msra.mxu0 0.0
  %306 = vmatprep.mubr.f32.mxu0 %v173
  %307 = vmatmul.mubr.f32.gmra.mxu0 %v165
  %v308 = vpop.f32.mrf.mxu0
  %v309 = vadd.f32 %v152, %v308
  %v310 = vpop.f32.mrf.mxu0
  %311 = vdwg.mxu0
  %312 = vmatprep.subr.mxu0 0.0
  %313 = vmatpush1.xpose.msra.mxu0 0.0
  %314 = vmatprep.subr.mxu0 0.0
  %315 = vmatpush1.xpose.msra.mxu0 0.0
  %316 = vmatprep.subr.mxu0 0.0
  %317 = vmatpush1.xpose.msra.mxu0 0.0
  %318 = vmatprep.subr.mxu0 0.0
  %319 = vmatpush1.xpose.msra.mxu0 0.0
  %320 = vmatprep.subr.mxu0 0.0
  %321 = vmatpush1.xpose.msra.mxu0 0.0
  %322 = vmatprep.subr.mxu0 0.0
  %323 = vmatpush1.xpose.msra.mxu0 0.0
  %324 = vmatprep.subr.mxu0 0.0
  %325 = vmatpush1.xpose.msra.mxu0 0.0
  %326 = vmatprep.subr.mxu0 0.0
  %327 = vmatpush1.xpose.msra.mxu0 0.0
  %328 = vmatprep.subr.mxu0 0.0
  %329 = vmatpush1.xpose.msra.mxu0 0.0
  %330 = vmatprep.subr.mxu0 %v135
  %331 = vmatpush1.xpose.msra.mxu0 %v134
  %332 = vmatprep.subr.mxu0 %v119
  %333 = vmatpush1.xpose.msra.mxu0 %v118
  %334 = vmatprep.subr.mxu0 %v103
  %335 = vmatpush1.xpose.msra.mxu0 %v102
  %336 = vmatprep.subr.mxu0 %v87
  %337 = vmatpush1.xpose.msra.mxu0 %v86
  %338 = vmatprep.subr.mxu0 %v71
  %339 = vmatpush1.xpose.msra.mxu0 %v70
  %340 = vmatprep.subr.mxu0 %v55
  %341 = vmatpush1.xpose.msra.mxu0 %v54
  %342 = vmatprep.subr.mxu0 %v39
  %343 = vmatpush1.xpose.msra.mxu0 %v38
  %344 = vmatprep.subr.mxu0 0.0
  %345 = vmatpush2.xpose.msra.mxu0 0.0
  %346 = vmatprep.subr.mxu0 0.0
  %347 = vmatpush2.xpose.msra.mxu0 0.0
  %348 = vmatprep.subr.mxu0 0.0
  %349 = vmatpush2.xpose.msra.mxu0 0.0
  %350 = vmatprep.subr.mxu0 0.0
  %351 = vmatpush2.xpose.msra.mxu0 0.0
  %352 = vmatprep.subr.mxu0 0.0
  %353 = vmatpush2.xpose.msra.mxu0 0.0
  %354 = vmatprep.subr.mxu0 0.0
  %355 = vmatpush2.xpose.msra.mxu0 0.0
  %356 = vmatprep.subr.mxu0 0.0
  %357 = vmatpush2.xpose.msra.mxu0 0.0
  %358 = vmatprep.subr.mxu0 0.0
  %359 = vmatpush2.xpose.msra.mxu0 0.0
  %360 = vmatprep.subr.mxu0 0.0
  %361 = vmatpush2.xpose.msra.mxu0 0.0
  %362 = vmatprep.subr.mxu0 0.0
  %363 = vmatpush2.xpose.msra.mxu0 0.0
  %364 = vmatprep.subr.mxu0 0.0
  %365 = vmatpush2.xpose.msra.mxu0 0.0
  %366 = vmatprep.subr.mxu0 0.0
  %367 = vmatpush2.xpose.msra.mxu0 0.0
  %368 = vmatprep.subr.mxu0 0.0
  %369 = vmatpush2.xpose.msra.mxu0 0.0
  %370 = vmatprep.subr.mxu0 0.0
  %371 = vmatpush2.xpose.msra.mxu0 0.0
  %372 = vmatprep.subr.mxu0 0.0
  %373 = vmatpush2.xpose.msra.mxu0 0.0
  %374 = vmatprep.subr.mxu0 0.0
  %375 = vmatpush2.xpose.msra.mxu0 0.0
  %376 = vmatprep.mubr.f32.mxu0 %v174
  %377 = vmatmul.mubr.f32.gmra.mxu0 %v172
  %v378 = vpop.f32.mrf.mxu0
  %v379 = vadd.f32 %v309, %v378
  %v380 = vpop.f32.mrf.mxu0
  %381 = vdwg.mxu0
  %382 = vmatprep.subr.mxu0 0.0
  %383 = vmatpush1.xpose.msra.mxu0 0.0
  %384 = vmatprep.subr.mxu0 0.0
  %385 = vmatpush1.xpose.msra.mxu0 0.0
  %386 = vmatprep.subr.mxu0 0.0
  %387 = vmatpush1.xpose.msra.mxu0 0.0
  %388 = vmatprep.subr.mxu0 0.0
  %389 = vmatpush1.xpose.msra.mxu0 0.0
  %390 = vmatprep.subr.mxu0 0.0
  %391 = vmatpush1.xpose.msra.mxu0 0.0
  %392 = vmatprep.subr.mxu0 0.0
  %393 = vmatpush1.xpose.msra.mxu0 0.0
  %394 = vmatprep.subr.mxu0 0.0
  %395 = vmatpush1.xpose.msra.mxu0 0.0
  %396 = vmatprep.subr.mxu0 0.0
  %397 = vmatpush1.xpose.msra.mxu0 0.0
  %398 = vmatprep.subr.mxu0 0.0
  %399 = vmatpush1.xpose.msra.mxu0 0.0
  %400 = vmatprep.subr.mxu0 %v137
  %401 = vmatpush1.xpose.msra.mxu0 %v136
  %402 = vmatprep.subr.mxu0 %v121
  %403 = vmatpush1.xpose.msra.mxu0 %v120
  %404 = vmatprep.subr.mxu0 %v105
  %405 = vmatpush1.xpose.msra.mxu0 %v104
  %406 = vmatprep.subr.mxu0 %v89
  %407 = vmatpush1.xpose.msra.mxu0 %v88
  %408 = vmatprep.subr.mxu0 %v73
  %409 = vmatpush1.xpose.msra.mxu0 %v72
  %410 = vmatprep.subr.mxu0 %v57
  %411 = vmatpush1.xpose.msra.mxu0 %v56
  %412 = vmatprep.subr.mxu0 %v41
  %413 = vmatpush1.xpose.msra.mxu0 %v40
  %414 = vmatprep.subr.mxu0 0.0
  %415 = vmatpush2.xpose.msra.mxu0 0.0
  %416 = vmatprep.subr.mxu0 0.0
  %417 = vmatpush2.xpose.msra.mxu0 0.0
  %418 = vmatprep.subr.mxu0 0.0
  %419 = vmatpush2.xpose.msra.mxu0 0.0
  %420 = vmatprep.subr.mxu0 0.0
  %421 = vmatpush2.xpose.msra.mxu0 0.0
  %422 = vmatprep.subr.mxu0 0.0
  %423 = vmatpush2.xpose.msra.mxu0 0.0
  %424 = vmatprep.subr.mxu0 0.0
  %425 = vmatpush2.xpose.msra.mxu0 0.0
  %426 = vmatprep.subr.mxu0 0.0
  %427 = vmatpush2.xpose.msra.mxu0 0.0
  %428 = vmatprep.subr.mxu0 0.0
  %429 = vmatpush2.xpose.msra.mxu0 0.0
  %430 = vmatprep.subr.mxu0 0.0
  %431 = vmatpush2.xpose.msra.mxu0 0.0
  %432 = vmatprep.subr.mxu0 0.0
  %433 = vmatpush2.xpose.msra.mxu0 0.0
  %434 = vmatprep.subr.mxu0 0.0
  %435 = vmatpush2.xpose.msra.mxu0 0.0
  %436 = vmatprep.subr.mxu0 0.0
  %437 = vmatpush2.xpose.msra.mxu0 0.0
  %438 = vmatprep.subr.mxu0 0.0
  %439 = vmatpush2.xpose.msra.mxu0 0.0
  %440 = vmatprep.subr.mxu0 0.0
  %441 = vmatpush2.xpose.msra.mxu0 0.0
  %442 = vmatprep.subr.mxu0 0.0
  %443 = vmatpush2.xpose.msra.mxu0 0.0
  %444 = vmatprep.subr.mxu0 0.0
  %445 = vmatpush2.xpose.msra.mxu0 0.0
  %446 = vmatprep.mubr.f32.mxu0 %v190
  %447 = vmatmul.mubr.f32.gmra.mxu0 %v182
  %v448 = vpop.f32.mrf.mxu0
  %v449 = vadd.f32 %v379, %v448
  %v450 = vpop.f32.mrf.mxu0
  %451 = vdwg.mxu0
  %452 = vmatprep.subr.mxu0 0.0
  %453 = vmatpush1.xpose.msra.mxu0 0.0
  %454 = vmatprep.subr.mxu0 0.0
  %455 = vmatpush1.xpose.msra.mxu0 0.0
  %456 = vmatprep.subr.mxu0 0.0
  %457 = vmatpush1.xpose.msra.mxu0 0.0
  %458 = vmatprep.subr.mxu0 0.0
  %459 = vmatpush1.xpose.msra.mxu0 0.0
  %460 = vmatprep.subr.mxu0 0.0
  %461 = vmatpush1.xpose.msra.mxu0 0.0
  %462 = vmatprep.subr.mxu0 0.0
  %463 = vmatpush1.xpose.msra.mxu0 0.0
  %464 = vmatprep.subr.mxu0 0.0
  %465 = vmatpush1.xpose.msra.mxu0 0.0
  %466 = vmatprep.subr.mxu0 0.0
  %467 = vmatpush1.xpose.msra.mxu0 0.0
  %468 = vmatprep.subr.mxu0 0.0
  %469 = vmatpush1.xpose.msra.mxu0 0.0
  %470 = vmatprep.subr.mxu0 %v139
  %471 = vmatpush1.xpose.msra.mxu0 %v138
  %472 = vmatprep.subr.mxu0 %v123
  %473 = vmatpush1.xpose.msra.mxu0 %v122
  %474 = vmatprep.subr.mxu0 %v107
  %475 = vmatpush1.xpose.msra.mxu0 %v106
  %476 = vmatprep.subr.mxu0 %v91
  %477 = vmatpush1.xpose.msra.mxu0 %v90
  %478 = vmatprep.subr.mxu0 %v75
  %479 = vmatpush1.xpose.msra.mxu0 %v74
  %480 = vmatprep.subr.mxu0 %v59
  %481 = vmatpush1.xpose.msra.mxu0 %v58
  %482 = vmatprep.subr.mxu0 %v43
  %483 = vmatpush1.xpose.msra.mxu0 %v42
  %484 = vmatprep.subr.mxu0 0.0
  %485 = vmatpush2.xpose.msra.mxu0 0.0
  %486 = vmatprep.subr.mxu0 0.0
  %487 = vmatpush2.xpose.msra.mxu0 0.0
  %488 = vmatprep.subr.mxu0 0.0
  %489 = vmatpush2.xpose.msra.mxu0 0.0
  %490 = vmatprep.subr.mxu0 0.0
  %491 = vmatpush2.xpose.msra.mxu0 0.0
  %492 = vmatprep.subr.mxu0 0.0
  %493 = vmatpush2.xpose.msra.mxu0 0.0
  %494 = vmatprep.subr.mxu0 0.0
  %495 = vmatpush2.xpose.msra.mxu0 0.0
  %496 = vmatprep.subr.mxu0 0.0
  %497 = vmatpush2.xpose.msra.mxu0 0.0
  %498 = vmatprep.subr.mxu0 0.0
  %499 = vmatpush2.xpose.msra.mxu0 0.0
  %500 = vmatprep.subr.mxu0 0.0
  %501 = vmatpush2.xpose.msra.mxu0 0.0
  %502 = vmatprep.subr.mxu0 0.0
  %503 = vmatpush2.xpose.msra.mxu0 0.0
  %504 = vmatprep.subr.mxu0 0.0
  %505 = vmatpush2.xpose.msra.mxu0 0.0
  %506 = vmatprep.subr.mxu0 0.0
  %507 = vmatpush2.xpose.msra.mxu0 0.0
  %508 = vmatprep.subr.mxu0 0.0
  %509 = vmatpush2.xpose.msra.mxu0 0.0
  %510 = vmatprep.subr.mxu0 0.0
  %511 = vmatpush2.xpose.msra.mxu0 0.0
  %512 = vmatprep.subr.mxu0 0.0
  %513 = vmatpush2.xpose.msra.mxu0 0.0
  %514 = vmatprep.subr.mxu0 0.0
  %515 = vmatpush2.xpose.msra.mxu0 0.0
  %516 = vmatprep.mubr.f32.mxu0 %v191
  %517 = vmatmul.mubr.f32.gmra.mxu0 %v189
  %v518 = vpop.f32.mrf.mxu0
  %v519 = vadd.f32 %v449, %v518
  %v520 = vpop.f32.mrf.mxu0
  %521 = vdwg.mxu0
  %522 = vmatprep.subr.mxu0 0.0
  %523 = vmatpush1.xpose.msra.mxu0 0.0
  %524 = vmatprep.subr.mxu0 0.0
  %525 = vmatpush1.xpose.msra.mxu0 0.0
  %526 = vmatprep.subr.mxu0 0.0
  %527 = vmatpush1.xpose.msra.mxu0 0.0
  %528 = vmatprep.subr.mxu0 0.0
  %529 = vmatpush1.xpose.msra.mxu0 0.0
  %530 = vmatprep.subr.mxu0 0.0
  %531 = vmatpush1.xpose.msra.mxu0 0.0
  %532 = vmatprep.subr.mxu0 0.0
  %533 = vmatpush1.xpose.msra.mxu0 0.0
  %534 = vmatprep.subr.mxu0 0.0
  %535 = vmatpush1.xpose.msra.mxu0 0.0
  %536 = vmatprep.subr.mxu0 0.0
  %537 = vmatpush1.xpose.msra.mxu0 0.0
  %538 = vmatprep.subr.mxu0 0.0
  %539 = vmatpush1.xpose.msra.mxu0 0.0
  %540 = vmatprep.subr.mxu0 %v141
  %541 = vmatpush1.xpose.msra.mxu0 %v140
  %542 = vmatprep.subr.mxu0 %v125
  %543 = vmatpush1.xpose.msra.mxu0 %v124
  %544 = vmatprep.subr.mxu0 %v109
  %545 = vmatpush1.xpose.msra.mxu0 %v108
  %546 = vmatprep.subr.mxu0 %v93
  %547 = vmatpush1.xpose.msra.mxu0 %v92
  %548 = vmatprep.subr.mxu0 %v77
  %549 = vmatpush1.xpose.msra.mxu0 %v76
  %550 = vmatprep.subr.mxu0 %v61
  %551 = vmatpush1.xpose.msra.mxu0 %v60
  %552 = vmatprep.subr.mxu0 %v45
  %553 = vmatpush1.xpose.msra.mxu0 %v44
  %554 = vmatprep.subr.mxu0 0.0
  %555 = vmatpush2.xpose.msra.mxu0 0.0
  %556 = vmatprep.subr.mxu0 0.0
  %557 = vmatpush2.xpose.msra.mxu0 0.0
  %558 = vmatprep.subr.mxu0 0.0
  %559 = vmatpush2.xpose.msra.mxu0 0.0
  %560 = vmatprep.subr.mxu0 0.0
  %561 = vmatpush2.xpose.msra.mxu0 0.0
  %562 = vmatprep.subr.mxu0 0.0
  %563 = vmatpush2.xpose.msra.mxu0 0.0
  %564 = vmatprep.subr.mxu0 0.0
  %565 = vmatpush2.xpose.msra.mxu0 0.0
  %566 = vmatprep.subr.mxu0 0.0
  %567 = vmatpush2.xpose.msra.mxu0 0.0
  %568 = vmatprep.subr.mxu0 0.0
  %569 = vmatpush2.xpose.msra.mxu0 0.0
  %570 = vmatprep.subr.mxu0 0.0
  %571 = vmatpush2.xpose.msra.mxu0 0.0
  %572 = vmatprep.subr.mxu0 0.0
  %573 = vmatpush2.xpose.msra.mxu0 0.0
  %574 = vmatprep.subr.mxu0 0.0
  %575 = vmatpush2.xpose.msra.mxu0 0.0
  %576 = vmatprep.subr.mxu0 0.0
  %577 = vmatpush2.xpose.msra.mxu0 0.0
  %578 = vmatprep.subr.mxu0 0.0
  %579 = vmatpush2.xpose.msra.mxu0 0.0
  %580 = vmatprep.subr.mxu0 0.0
  %581 = vmatpush2.xpose.msra.mxu0 0.0
  %582 = vmatprep.subr.mxu0 0.0
  %583 = vmatpush2.xpose.msra.mxu0 0.0
  %584 = vmatprep.subr.mxu0 0.0
  %585 = vmatpush2.xpose.msra.mxu0 0.0
  %586 = vmatprep.mubr.f32.mxu0 %v207
  %587 = vmatmul.mubr.f32.gmra.mxu0 %v199
  %v588 = vpop.f32.mrf.mxu0
  %v589 = vadd.f32 %v519, %v588
  %v590 = vpop.f32.mrf.mxu0
  %591 = vdwg.mxu0
  %592 = vmatprep.subr.mxu0 0.0
  %593 = vmatpush1.xpose.msra.mxu0 0.0
  %594 = vmatprep.subr.mxu0 0.0
  %595 = vmatpush1.xpose.msra.mxu0 0.0
  %596 = vmatprep.subr.mxu0 0.0
  %597 = vmatpush1.xpose.msra.mxu0 0.0
  %598 = vmatprep.subr.mxu0 0.0
  %599 = vmatpush1.xpose.msra.mxu0 0.0
  %600 = vmatprep.subr.mxu0 0.0
  %601 = vmatpush1.xpose.msra.mxu0 0.0
  %602 = vmatprep.subr.mxu0 0.0
  %603 = vmatpush1.xpose.msra.mxu0 0.0
  %604 = vmatprep.subr.mxu0 0.0
  %605 = vmatpush1.xpose.msra.mxu0 0.0
  %606 = vmatprep.subr.mxu0 0.0
  %607 = vmatpush1.xpose.msra.mxu0 0.0
  %608 = vmatprep.subr.mxu0 0.0
  %609 = vmatpush1.xpose.msra.mxu0 0.0
  %610 = vmatprep.subr.mxu0 %v143
  %611 = vmatpush1.xpose.msra.mxu0 %v142
  %612 = vmatprep.subr.mxu0 %v127
  %613 = vmatpush1.xpose.msra.mxu0 %v126
  %614 = vmatprep.subr.mxu0 %v111
  %615 = vmatpush1.xpose.msra.mxu0 %v110
  %616 = vmatprep.subr.mxu0 %v95
  %617 = vmatpush1.xpose.msra.mxu0 %v94
  %618 = vmatprep.subr.mxu0 %v79
  %619 = vmatpush1.xpose.msra.mxu0 %v78
  %620 = vmatprep.subr.mxu0 %v63
  %621 = vmatpush1.xpose.msra.mxu0 %v62
  %622 = vmatprep.subr.mxu0 %v47
  %623 = vmatpush1.xpose.msra.mxu0 %v46
  %624 = vmatprep.subr.mxu0 0.0
  %625 = vmatpush2.xpose.msra.mxu0 0.0
  %626 = vmatprep.subr.mxu0 0.0
  %627 = vmatpush2.xpose.msra.mxu0 0.0
  %628 = vmatprep.subr.mxu0 0.0
  %629 = vmatpush2.xpose.msra.mxu0 0.0
  %630 = vmatprep.subr.mxu0 0.0
  %631 = vmatpush2.xpose.msra.mxu0 0.0
  %632 = vmatprep.subr.mxu0 0.0
  %633 = vmatpush2.xpose.msra.mxu0 0.0
  %634 = vmatprep.subr.mxu0 0.0
  %635 = vmatpush2.xpose.msra.mxu0 0.0
  %636 = vmatprep.subr.mxu0 0.0
  %637 = vmatpush2.xpose.msra.mxu0 0.0
  %638 = vmatprep.subr.mxu0 0.0
  %639 = vmatpush2.xpose.msra.mxu0 0.0
  %640 = vmatprep.subr.mxu0 0.0
  %641 = vmatpush2.xpose.msra.mxu0 0.0
  %642 = vmatprep.subr.mxu0 0.0
  %643 = vmatpush2.xpose.msra.mxu0 0.0
  %644 = vmatprep.subr.mxu0 0.0
  %645 = vmatpush2.xpose.msra.mxu0 0.0
  %646 = vmatprep.subr.mxu0 0.0
  %647 = vmatpush2.xpose.msra.mxu0 0.0
  %648 = vmatprep.subr.mxu0 0.0
  %649 = vmatpush2.xpose.msra.mxu0 0.0
  %650 = vmatprep.subr.mxu0 0.0
  %651 = vmatpush2.xpose.msra.mxu0 0.0
  %652 = vmatprep.subr.mxu0 0.0
  %653 = vmatpush2.xpose.msra.mxu0 0.0
  %654 = vmatprep.subr.mxu0 0.0
  %655 = vmatpush2.xpose.msra.mxu0 0.0
  %656 = vmatprep.mubr.f32.mxu0 %v208
  %657 = vmatmul.mubr.f32.gmra.mxu0 %v206
  %v658 = vpop.f32.mrf.mxu0
  %v659 = vadd.f32 %v589, %v658
  %v660 = vpop.f32.mrf.mxu0
  %661 = vdwg.mxu0
  %662 = vmatprep.subr.mxu0 0.0
  %663 = vmatpush1.xpose.msra.mxu0 0.0
  %664 = vmatprep.subr.mxu0 0.0
  %665 = vmatpush1.xpose.msra.mxu0 0.0
  %666 = vmatprep.subr.mxu0 0.0
  %667 = vmatpush1.xpose.msra.mxu0 0.0
  %668 = vmatprep.subr.mxu0 0.0
  %669 = vmatpush1.xpose.msra.mxu0 0.0
  %670 = vmatprep.subr.mxu0 0.0
  %671 = vmatpush1.xpose.msra.mxu0 0.0
  %672 = vmatprep.subr.mxu0 0.0
  %673 = vmatpush1.xpose.msra.mxu0 0.0
  %674 = vmatprep.subr.mxu0 0.0
  %675 = vmatpush1.xpose.msra.mxu0 0.0
  %676 = vmatprep.subr.mxu0 0.0
  %677 = vmatpush1.xpose.msra.mxu0 0.0
  %678 = vmatprep.subr.mxu0 0.0
  %679 = vmatpush1.xpose.msra.mxu0 0.0
  %680 = vmatprep.subr.mxu0 %v145
  %681 = vmatpush1.xpose.msra.mxu0 %v144
  %682 = vmatprep.subr.mxu0 %v129
  %683 = vmatpush1.xpose.msra.mxu0 %v128
  %684 = vmatprep.subr.mxu0 %v113
  %685 = vmatpush1.xpose.msra.mxu0 %v112
  %686 = vmatprep.subr.mxu0 %v97
  %687 = vmatpush1.xpose.msra.mxu0 %v96
  %688 = vmatprep.subr.mxu0 %v81
  %689 = vmatpush1.xpose.msra.mxu0 %v80
  %690 = vmatprep.subr.mxu0 %v65
  %691 = vmatpush1.xpose.msra.mxu0 %v64
  %692 = vmatprep.subr.mxu0 %v49
  %693 = vmatpush1.xpose.msra.mxu0 %v48
  %694 = vmatprep.subr.mxu0 0.0
  %695 = vmatpush2.xpose.msra.mxu0 0.0
  %696 = vmatprep.subr.mxu0 0.0
  %697 = vmatpush2.xpose.msra.mxu0 0.0
  %698 = vmatprep.subr.mxu0 0.0
  %699 = vmatpush2.xpose.msra.mxu0 0.0
  %700 = vmatprep.subr.mxu0 0.0
  %701 = vmatpush2.xpose.msra.mxu0 0.0
  %702 = vmatprep.subr.mxu0 0.0
  %703 = vmatpush2.xpose.msra.mxu0 0.0
  %704 = vmatprep.subr.mxu0 0.0
  %705 = vmatpush2.xpose.msra.mxu0 0.0
  %706 = vmatprep.subr.mxu0 0.0
  %707 = vmatpush2.xpose.msra.mxu0 0.0
  %708 = vmatprep.subr.mxu0 0.0
  %709 = vmatpush2.xpose.msra.mxu0 0.0
  %710 = vmatprep.subr.mxu0 0.0
  %711 = vmatpush2.xpose.msra.mxu0 0.0
  %712 = vmatprep.subr.mxu0 0.0
  %713 = vmatpush2.xpose.msra.mxu0 0.0
  %714 = vmatprep.subr.mxu0 0.0
  %715 = vmatpush2.xpose.msra.mxu0 0.0
  %716 = vmatprep.subr.mxu0 0.0
  %717 = vmatpush2.xpose.msra.mxu0 0.0
  %718 = vmatprep.subr.mxu0 0.0
  %719 = vmatpush2.xpose.msra.mxu0 0.0
  %720 = vmatprep.subr.mxu0 0.0
  %721 = vmatpush2.xpose.msra.mxu0 0.0
  %722 = vmatprep.subr.mxu0 0.0
  %723 = vmatpush2.xpose.msra.mxu0 0.0
  %724 = vmatprep.subr.mxu0 0.0
  %725 = vmatpush2.xpose.msra.mxu0 0.0
  %726 = vmatprep.mubr.f32.mxu0 %v224
  %727 = vmatmul.mubr.f32.gmra.mxu0 %v216
  %v728 = vpop.f32.mrf.mxu0
  %v729 = vadd.f32 %v659, %v728
  %v730 = vpop.f32.mrf.mxu0
  %731 = vdwg.mxu0
  %732 = vmatprep.subr.mxu0 0.0
  %733 = vmatpush1.xpose.msra.mxu0 0.0
  %734 = vmatprep.subr.mxu0 0.0
  %735 = vmatpush1.xpose.msra.mxu0 0.0
  %736 = vmatprep.subr.mxu0 0.0
  %737 = vmatpush1.xpose.msra.mxu0 0.0
  %738 = vmatprep.subr.mxu0 0.0
  %739 = vmatpush1.xpose.msra.mxu0 0.0
  %740 = vmatprep.subr.mxu0 0.0
  %741 = vmatpush1.xpose.msra.mxu0 0.0
  %742 = vmatprep.subr.mxu0 0.0
  %743 = vmatpush1.xpose.msra.mxu0 0.0
  %744 = vmatprep.subr.mxu0 0.0
  %745 = vmatpush1.xpose.msra.mxu0 0.0
  %746 = vmatprep.subr.mxu0 0.0
  %747 = vmatpush1.xpose.msra.mxu0 0.0
  %748 = vmatprep.subr.mxu0 0.0
  %749 = vmatpush1.xpose.msra.mxu0 0.0
  %750 = vmatprep.subr.mxu0 %v147
  %751 = vmatpush1.xpose.msra.mxu0 %v146
  %752 = vmatprep.subr.mxu0 %v131
  %753 = vmatpush1.xpose.msra.mxu0 %v130
  %754 = vmatprep.subr.mxu0 %v115
  %755 = vmatpush1.xpose.msra.mxu0 %v114
  %756 = vmatprep.subr.mxu0 %v99
  %757 = vmatpush1.xpose.msra.mxu0 %v98
  %758 = vmatprep.subr.mxu0 %v83
  %759 = vmatpush1.xpose.msra.mxu0 %v82
  %760 = vmatprep.subr.mxu0 %v67
  %761 = vmatpush1.xpose.msra.mxu0 %v66
  %762 = vmatprep.subr.mxu0 %v51
  %763 = vmatpush1.xpose.msra.mxu0 %v50
  %764 = vmatprep.subr.mxu0 0.0
  %765 = vmatpush2.xpose.msra.mxu0 0.0
  %766 = vmatprep.subr.mxu0 0.0
  %767 = vmatpush2.xpose.msra.mxu0 0.0
  %768 = vmatprep.subr.mxu0 0.0
  %769 = vmatpush2.xpose.msra.mxu0 0.0
  %770 = vmatprep.subr.mxu0 0.0
  %771 = vmatpush2.xpose.msra.mxu0 0.0
  %772 = vmatprep.subr.mxu0 0.0
  %773 = vmatpush2.xpose.msra.mxu0 0.0
  %774 = vmatprep.subr.mxu0 0.0
  %775 = vmatpush2.xpose.msra.mxu0 0.0
  %776 = vmatprep.subr.mxu0 0.0
  %777 = vmatpush2.xpose.msra.mxu0 0.0
  %778 = vmatprep.subr.mxu0 0.0
  %779 = vmatpush2.xpose.msra.mxu0 0.0
  %780 = vmatprep.subr.mxu0 0.0
  %781 = vmatpush2.xpose.msra.mxu0 0.0
  %782 = vmatprep.subr.mxu0 0.0
  %783 = vmatpush2.xpose.msra.mxu0 0.0
  %784 = vmatprep.subr.mxu0 0.0
  %785 = vmatpush2.xpose.msra.mxu0 0.0
  %786 = vmatprep.subr.mxu0 0.0
  %787 = vmatpush2.xpose.msra.mxu0 0.0
  %788 = vmatprep.subr.mxu0 0.0
  %789 = vmatpush2.xpose.msra.mxu0 0.0
  %790 = vmatprep.subr.mxu0 0.0
  %791 = vmatpush2.xpose.msra.mxu0 0.0
  %792 = vmatprep.subr.mxu0 0.0
  %793 = vmatpush2.xpose.msra.mxu0 0.0
  %794 = vmatprep.subr.mxu0 0.0
  %795 = vmatpush2.xpose.msra.mxu0 0.0
  %796 = vmatprep.mubr.f32.mxu0 %v225
  %797 = vmatmul.mubr.f32.gmra.mxu0 %v223
  %v798 = vpop.f32.mrf.mxu0
  %v799 = vadd.f32 %v729, %v798
  %v800 = vpop.f32.mrf.mxu0
  %801 = vdwg.mxu0
  %v802 = vsub.f32 0.0, %v799
  %v803 = vmul.f32 %v802, 1.442695
  %v804 = vpow.pop %v803
  %v805 = vadd.f32 %v804, 1.0
  %v806 = vrcp.pop %v805
  %v807 = vmul.f32 1.0, %v806
  %v808 = vld [vmem:[%s3] sm:$0xff]
  %v809 = vld [vmem:[%s3 + $0x8] sm:$0xff]
  %v810 = vld [vmem:[%s3 + $0x10] sm:$0xff]
  %v811 = vld [vmem:[%s3 + $0x18] sm:$0xff]
  %v812 = vld [vmem:[%s3 + $0x20] sm:$0xff]
  %v813 = vld [vmem:[%s3 + $0x28] sm:$0xff]
  %v814 = vld [vmem:[%s3 + $0x30] sm:$0xff]
  %vm815 = vcmask 457728
  %v817 = vsel %vm815, %v807, 0
  %819 = vmatprep.subr.mxu0 0.0
  %820 = vmatpush1.msra.mxu0 0.0
  %821 = vmatprep.subr.mxu0 0.0
  %822 = vmatpush1.msra.mxu0 0.0
  %823 = vmatprep.subr.mxu0 0.0
  %824 = vmatpush1.msra.mxu0 0.0
  %825 = vmatprep.subr.mxu0 0.0
  %826 = vmatpush1.msra.mxu0 0.0
  %827 = vmatprep.subr.mxu0 0.0
  %828 = vmatpush1.msra.mxu0 0.0
  %829 = vmatprep.subr.mxu0 0.0
  %830 = vmatpush1.msra.mxu0 0.0
  %831 = vmatprep.subr.mxu0 0.0
  %832 = vmatpush1.msra.mxu0 0.0
  %833 = vmatprep.subr.mxu0 0.0
  %834 = vmatpush1.msra.mxu0 0.0
  %835 = vmatprep.subr.mxu0 0.0
  %836 = vmatpush1.msra.mxu0 0.0
  %837 = vmatprep.subr.mxu0 0.0
  %838 = vmatpush1.msra.mxu0 %v814
  %839 = vmatprep.subr.mxu0 0.0
  %840 = vmatpush1.msra.mxu0 %v813
  %841 = vmatprep.subr.mxu0 0.0
  %842 = vmatpush1.msra.mxu0 %v812
  %843 = vmatprep.subr.mxu0 0.0
  %844 = vmatpush1.msra.mxu0 %v811
  %845 = vmatprep.subr.mxu0 0.0
  %846 = vmatpush1.msra.mxu0 %v810
  %847 = vmatprep.subr.mxu0 0.0
  %848 = vmatpush1.msra.mxu0 %v809
  %849 = vmatprep.subr.mxu0 0.0
  %850 = vmatpush1.msra.mxu0 %v808
  %851 = vmatprep.subr.mxu0 0.0
  %852 = vmatpush2.msra.mxu0 0.0
  %853 = vmatprep.subr.mxu0 0.0
  %854 = vmatpush2.msra.mxu0 0.0
  %855 = vmatprep.subr.mxu0 0.0
  %856 = vmatpush2.msra.mxu0 0.0
  %857 = vmatprep.subr.mxu0 0.0
  %858 = vmatpush2.msra.mxu0 0.0
  %859 = vmatprep.subr.mxu0 0.0
  %860 = vmatpush2.msra.mxu0 0.0
  %861 = vmatprep.subr.mxu0 0.0
  %862 = vmatpush2.msra.mxu0 0.0
  %863 = vmatprep.subr.mxu0 0.0
  %864 = vmatpush2.msra.mxu0 0.0
  %865 = vmatprep.subr.mxu0 0.0
  %866 = vmatpush2.msra.mxu0 0.0
  %867 = vmatprep.subr.mxu0 0.0
  %868 = vmatpush2.msra.mxu0 0.0
  %869 = vmatprep.subr.mxu0 0.0
  %870 = vmatpush2.msra.mxu0 0.0
  %871 = vmatprep.subr.mxu0 0.0
  %872 = vmatpush2.msra.mxu0 0.0
  %873 = vmatprep.subr.mxu0 0.0
  %874 = vmatpush2.msra.mxu0 0.0
  %875 = vmatprep.subr.mxu0 0.0
  %876 = vmatpush2.msra.mxu0 0.0
  %877 = vmatprep.subr.mxu0 0.0
  %878 = vmatpush2.msra.mxu0 0.0
  %879 = vmatprep.subr.mxu0 0.0
  %880 = vmatpush2.msra.mxu0 0.0
  %881 = vmatprep.subr.mxu0 0.0
  %882 = vmatpush2.msra.mxu0 0.0
  %883 = vmatprep.mubr.f32.mxu0 0.0
  %884 = vmatmul.mubr.f32.gmra.mxu0 %v817
  %v885 = vpop.f32.mrf.mxu0
  %v886 = vadd.f32 0.0, %v885
  %v887 = vpop.f32.mrf.mxu0
  %888 = vdwg.mxu0
  %v889 = vld [vmem:[%s4] sm:$0xff]
  %v890 = vld [vmem:[%s4 + $0x8] sm:$0xf]
  %v891 = vld [vmem:[%s5] sm:$0xff]
  %v892 = vld [vmem:[%s5 + $0x8] sm:$0xf]
  %894 = vset.pattern.permute.xlu0 0
  %895 = vperm.xlu0 %894, %v891
  %v896 = vpop.permute.xlu0 %895
  %899 = vset.pattern.permute.xlu0 0
  %900 = vperm.xlu0 %899, %v892
  %v901 = vpop.permute.xlu0 %900
  %vm903 = vcmask 15360
  %v905 = vsel %vm903, %v889, 0
  %v908 = vsel %vm903, %v890, 0
  %vm910 = vcmask 1041408
  %v912 = vsel %vm910, %v886, 0
  %914 = vmatprep.subr.mxu0 0.0
  %915 = vmatpush1.msra.mxu0 0.0
  %916 = vmatprep.subr.mxu0 0.0
  %917 = vmatpush1.msra.mxu0 0.0
  %918 = vmatprep.subr.mxu0 0.0
  %919 = vmatpush1.msra.mxu0 0.0
  %920 = vmatprep.subr.mxu0 0.0
  %921 = vmatpush1.msra.mxu0 0.0
  %922 = vmatprep.subr.mxu0 0.0
  %923 = vmatpush1.msra.mxu0 0.0
  %924 = vmatprep.subr.mxu0 0.0
  %925 = vmatpush1.msra.mxu0 0.0
  %926 = vmatprep.subr.mxu0 0.0
  %927 = vmatpush1.msra.mxu0 0.0
  %928 = vmatprep.subr.mxu0 0.0
  %929 = vmatpush1.msra.mxu0 0.0
  %930 = vmatprep.subr.mxu0 0.0
  %931 = vmatpush1.msra.mxu0 0.0
  %932 = vmatprep.subr.mxu0 0.0
  %933 = vmatpush1.msra.mxu0 0.0
  %934 = vmatprep.subr.mxu0 0.0
  %935 = vmatpush1.msra.mxu0 0.0
  %936 = vmatprep.subr.mxu0 0.0
  %937 = vmatpush1.msra.mxu0 0.0
  %938 = vmatprep.subr.mxu0 0.0
  %939 = vmatpush1.msra.mxu0 0.0
  %940 = vmatprep.subr.mxu0 0.0
  %941 = vmatpush1.msra.mxu0 0.0
  %942 = vmatprep.subr.mxu0 0.0
  %943 = vmatpush1.msra.mxu0 0.0
  %944 = vmatprep.subr.mxu0 0.0
  %945 = vmatpush1.msra.mxu0 %v912
  %946 = vmatprep.subr.mxu0 0.0
  %947 = vmatpush2.msra.mxu0 0.0
  %948 = vmatprep.subr.mxu0 0.0
  %949 = vmatpush2.msra.mxu0 0.0
  %950 = vmatprep.subr.mxu0 0.0
  %951 = vmatpush2.msra.mxu0 0.0
  %952 = vmatprep.subr.mxu0 0.0
  %953 = vmatpush2.msra.mxu0 0.0
  %954 = vmatprep.subr.mxu0 0.0
  %955 = vmatpush2.msra.mxu0 0.0
  %956 = vmatprep.subr.mxu0 0.0
  %957 = vmatpush2.msra.mxu0 0.0
  %958 = vmatprep.subr.mxu0 0.0
  %959 = vmatpush2.msra.mxu0 0.0
  %960 = vmatprep.subr.mxu0 0.0
  %961 = vmatpush2.msra.mxu0 0.0
  %962 = vmatprep.subr.mxu0 0.0
  %963 = vmatpush2.msra.mxu0 0.0
  %964 = vmatprep.subr.mxu0 0.0
  %965 = vmatpush2.msra.mxu0 0.0
  %966 = vmatprep.subr.mxu0 0.0
  %967 = vmatpush2.msra.mxu0 0.0
  %968 = vmatprep.subr.mxu0 0.0
  %969 = vmatpush2.msra.mxu0 0.0
  %970 = vmatprep.subr.mxu0 0.0
  %971 = vmatpush2.msra.mxu0 0.0
  %972 = vmatprep.subr.mxu0 0.0
  %973 = vmatpush2.msra.mxu0 0.0
  %974 = vmatprep.subr.mxu0 0.0
  %975 = vmatpush2.msra.mxu0 0.0
  %976 = vmatprep.subr.mxu0 0.0
  %977 = vmatpush2.msra.mxu0 0.0
  %978 = vmatprep.mubr.f32.mxu0 0.0
  %979 = vmatmul.mubr.f32.gmra.mxu0 %v905
  %v980 = vpop.f32.mrf.mxu0
  %v981 = vadd.f32 %v896, %v980
  %v982 = vpop.f32.mrf.mxu0
  %983 = vmatprep.mubr.f32.mxu0 0.0
  %984 = vmatmul.mubr.f32.gmra.mxu0 %v908
  %v985 = vpop.f32.mrf.mxu0
  %v986 = vadd.f32 %v901, %v985
  %v987 = vpop.f32.mrf.mxu0
  %988 = vdwg.mxu0
  %v989 = vsub.f32 0.0, %v981
  %v990 = vsub.f32 0.0, %v986
  %v991 = vmul.f32 %v989, 1.442695
  %v992 = vpow.pop %v991
  %v993 = vmul.f32 %v990, 1.442695
  %v994 = vpow.pop %v993
  %v995 = vadd.f32 %v992, 1.0
  %v996 = vadd.f32 %v994, 1.0
  %v997 = vrcp.pop %v995
  %v998 = vmul.f32 1.0, %v997
  %v999 = vrcp.pop %v996
  %v1000 = vmul.f32 1.0, %v999
  %v1001 = vld [vmem:[%s6] sm:$0xff]
  %v1002 = vld [vmem:[%s6 + $0x8] sm:$0x1]
  %vm1003 = vcmask 72704
  %v1005 = vsel %vm1003, %v998, 0
  %v1008 = vsel %vm1003, %v1000, 0
  %vm1010 = vcmask 1040384
  %v1012 = vsel %vm1010, %v1002, 0
  %1014 = vmatprep.subr.mxu0 0.0
  %1015 = vmatpush1.msra.mxu0 0.0
  %1016 = vmatprep.subr.mxu0 0.0
  %1017 = vmatpush1.msra.mxu0 0.0
  %1018 = vmatprep.subr.mxu0 0.0
  %1019 = vmatpush1.msra.mxu0 0.0
  %1020 = vmatprep.subr.mxu0 0.0
  %1021 = vmatpush1.msra.mxu0 0.0
  %1022 = vmatprep.subr.mxu0 0.0
  %1023 = vmatpush1.msra.mxu0 0.0
  %1024 = vmatprep.subr.mxu0 0.0
  %1025 = vmatpush1.msra.mxu0 0.0
  %1026 = vmatprep.subr.mxu0 0.0
  %1027 = vmatpush1.msra.mxu0 0.0
  %1028 = vmatprep.subr.mxu0 0.0
  %1029 = vmatpush1.msra.mxu0 0.0
  %1030 = vmatprep.subr.mxu0 0.0
  %1031 = vmatpush1.msra.mxu0 0.0
  %1032 = vmatprep.subr.mxu0 0.0
  %1033 = vmatpush1.msra.mxu0 0.0
  %1034 = vmatprep.subr.mxu0 0.0
  %1035 = vmatpush1.msra.mxu0 0.0
  %1036 = vmatprep.subr.mxu0 0.0
  %1037 = vmatpush1.msra.mxu0 0.0
  %1038 = vmatprep.subr.mxu0 0.0
  %1039 = vmatpush1.msra.mxu0 0.0
  %1040 = vmatprep.subr.mxu0 0.0
  %1041 = vmatpush1.msra.mxu0 0.0
  %1042 = vmatprep.subr.mxu0 0.0
  %1043 = vmatpush1.msra.mxu0 %v1012
  %1044 = vmatprep.subr.mxu0 0.0
  %1045 = vmatpush1.msra.mxu0 %v1001
  %1046 = vmatprep.subr.mxu0 0.0
  %1047 = vmatpush2.msra.mxu0 0.0
  %1048 = vmatprep.subr.mxu0 0.0
  %1049 = vmatpush2.msra.mxu0 0.0
  %1050 = vmatprep.subr.mxu0 0.0
  %1051 = vmatpush2.msra.mxu0 0.0
  %1052 = vmatprep.subr.mxu0 0.0
  %1053 = vmatpush2.msra.mxu0 0.0
  %1054 = vmatprep.subr.mxu0 0.0
  %1055 = vmatpush2.msra.mxu0 0.0
  %1056 = vmatprep.subr.mxu0 0.0
  %1057 = vmatpush2.msra.mxu0 0.0
  %1058 = vmatprep.subr.mxu0 0.0
  %1059 = vmatpush2.msra.mxu0 0.0
  %1060 = vmatprep.subr.mxu0 0.0
  %1061 = vmatpush2.msra.mxu0 0.0
  %1062 = vmatprep.subr.mxu0 0.0
  %1063 = vmatpush2.msra.mxu0 0.0
  %1064 = vmatprep.subr.mxu0 0.0
  %1065 = vmatpush2.msra.mxu0 0.0
  %1066 = vmatprep.subr.mxu0 0.0
  %1067 = vmatpush2.msra.mxu0 0.0
  %1068 = vmatprep.subr.mxu0 0.0
  %1069 = vmatpush2.msra.mxu0 0.0
  %1070 = vmatprep.subr.mxu0 0.0
  %1071 = vmatpush2.msra.mxu0 0.0
  %1072 = vmatprep.subr.mxu0 0.0
  %1073 = vmatpush2.msra.mxu0 0.0
  %1074 = vmatprep.subr.mxu0 0.0
  %1075 = vmatpush2.msra.mxu0 0.0
  %1076 = vmatprep.subr.mxu0 0.0
  %1077 = vmatpush2.msra.mxu0 0.0
  %1078 = vmatprep.mubr.f32.mxu0 0.0
  %1079 = vmatmul.mubr.f32.gmra.mxu0 %v1005
  %v1080 = vpop.f32.mrf.mxu0
  %v1081 = vadd.f32 0.0, %v1080
  %v1082 = vpop.f32.mrf.mxu0
  %1083 = vmatprep.mubr.f32.mxu0 0.0
  %1084 = vmatmul.mubr.f32.gmra.mxu0 %v1008
  %v1085 = vpop.f32.mrf.mxu0
  %v1086 = vadd.f32 0.0, %v1085
  %v1087 = vpop.f32.mrf.mxu0
  %1088 = vdwg.mxu0
  %v1089 = vld [vmem:[%s7] sm:$0xff]
  %v1090 = vld [vmem:[%s7 + $0x8] sm:$0xff]
  %v1091 = vld [vmem:[%s7 + $0x10] sm:$0xff]
  %s1092 = scalar_lea.vmem %s6, 16
  %v1093 = vld [vmem:[%s1092] sm:$0xff]
  %v1094 = vld [vmem:[%s1092 + $0x8] sm:$0x1]
  %v1096 = vsel %vm1010, %v1094, 0
  %1098 = vmatprep.subr.mxu0 0.0
  %1099 = vmatpush1.msra.mxu0 0.0
  %1100 = vmatprep.subr.mxu0 0.0
  %1101 = vmatpush1.msra.mxu0 0.0
  %1102 = vmatprep.subr.mxu0 0.0
  %1103 = vmatpush1.msra.mxu0 0.0
  %1104 = vmatprep.subr.mxu0 0.0
  %1105 = vmatpush1.msra.mxu0 0.0
  %1106 = vmatprep.subr.mxu0 0.0
  %1107 = vmatpush1.msra.mxu0 0.0
  %1108 = vmatprep.subr.mxu0 0.0
  %1109 = vmatpush1.msra.mxu0 0.0
  %1110 = vmatprep.subr.mxu0 0.0
  %1111 = vmatpush1.msra.mxu0 0.0
  %1112 = vmatprep.subr.mxu0 0.0
  %1113 = vmatpush1.msra.mxu0 0.0
  %1114 = vmatprep.subr.mxu0 0.0
  %1115 = vmatpush1.msra.mxu0 0.0
  %1116 = vmatprep.subr.mxu0 0.0
  %1117 = vmatpush1.msra.mxu0 0.0
  %1118 = vmatprep.subr.mxu0 0.0
  %1119 = vmatpush1.msra.mxu0 0.0
  %1120 = vmatprep.subr.mxu0 0.0
  %1121 = vmatpush1.msra.mxu0 0.0
  %1122 = vmatprep.subr.mxu0 0.0
  %1123 = vmatpush1.msra.mxu0 0.0
  %1124 = vmatprep.subr.mxu0 0.0
  %1125 = vmatpush1.msra.mxu0 0.0
  %1126 = vmatprep.subr.mxu0 0.0
  %1127 = vmatpush1.msra.mxu0 %v1096
  %1128 = vmatprep.subr.mxu0 0.0
  %1129 = vmatpush1.msra.mxu0 %v1093
  %1130 = vmatprep.subr.mxu0 0.0
  %1131 = vmatpush2.msra.mxu0 0.0
  %1132 = vmatprep.subr.mxu0 0.0
  %1133 = vmatpush2.msra.mxu0 0.0
  %1134 = vmatprep.subr.mxu0 0.0
  %1135 = vmatpush2.msra.mxu0 0.0
  %1136 = vmatprep.subr.mxu0 0.0
  %1137 = vmatpush2.msra.mxu0 0.0
  %1138 = vmatprep.subr.mxu0 0.0
  %1139 = vmatpush2.msra.mxu0 0.0
  %1140 = vmatprep.subr.mxu0 0.0
  %1141 = vmatpush2.msra.mxu0 0.0
  %1142 = vmatprep.subr.mxu0 0.0
  %1143 = vmatpush2.msra.mxu0 0.0
  %1144 = vmatprep.subr.mxu0 0.0
  %1145 = vmatpush2.msra.mxu0 0.0
  %1146 = vmatprep.subr.mxu0 0.0
  %1147 = vmatpush2.msra.mxu0 0.0
  %1148 = vmatprep.subr.mxu0 0.0
  %1149 = vmatpush2.msra.mxu0 0.0
  %1150 = vmatprep.subr.mxu0 0.0
  %1151 = vmatpush2.msra.mxu0 0.0
  %1152 = vmatprep.subr.mxu0 0.0
  %1153 = vmatpush2.msra.mxu0 0.0
  %1154 = vmatprep.subr.mxu0 0.0
  %1155 = vmatpush2.msra.mxu0 0.0
  %1156 = vmatprep.subr.mxu0 0.0
  %1157 = vmatpush2.msra.mxu0 0.0
  %1158 = vmatprep.subr.mxu0 0.0
  %1159 = vmatpush2.msra.mxu0 0.0
  %1160 = vmatprep.subr.mxu0 0.0
  %1161 = vmatpush2.msra.mxu0 0.0
  %1162 = vmatprep.mubr.f32.mxu0 0.0
  %1163 = vmatmul.mubr.f32.gmra.mxu0 %v1005
  %v1164 = vpop.f32.mrf.mxu0
  %v1165 = vadd.f32 0.0, %v1164
  %v1166 = vpop.f32.mrf.mxu0
  %1167 = vmatprep.mubr.f32.mxu0 0.0
  %1168 = vmatmul.mubr.f32.gmra.mxu0 %v1008
  %v1169 = vpop.f32.mrf.mxu0
  %v1170 = vadd.f32 0.0, %v1169
  %v1171 = vpop.f32.mrf.mxu0
  %1172 = vdwg.mxu0
  %s1173 = scalar_lea.vmem %s7, 24
  %v1174 = vld [vmem:[%s1173] sm:$0xff]
  %v1175 = vld [vmem:[%s1173 + $0x8] sm:$0xff]
  %v1176 = vld [vmem:[%s1173 + $0x10] sm:$0xff]
  %vm1177 = vcmask 97280
  %v1179 = vsel %vm1177, %v1174, 0
  %v1182 = vsel %vm1177, %v1175, 0
  %v1185 = vsel %vm1177, %v1176, 0
  %vm1187 = vcmask 1043456
  %v1189 = vsel %vm1187, %v1170, 0
  %1191 = vmatprep.subr.mxu0 0.0
  %1192 = vmatpush1.msra.mxu0 0.0
  %1193 = vmatprep.subr.mxu0 0.0
  %1194 = vmatpush1.msra.mxu0 0.0
  %1195 = vmatprep.subr.mxu0 0.0
  %1196 = vmatpush1.msra.mxu0 0.0
  %1197 = vmatprep.subr.mxu0 0.0
  %1198 = vmatpush1.msra.mxu0 0.0
  %1199 = vmatprep.subr.mxu0 0.0
  %1200 = vmatpush1.msra.mxu0 0.0
  %1201 = vmatprep.subr.mxu0 0.0
  %1202 = vmatpush1.msra.mxu0 0.0
  %1203 = vmatprep.subr.mxu0 0.0
  %1204 = vmatpush1.msra.mxu0 0.0
  %1205 = vmatprep.subr.mxu0 0.0
  %1206 = vmatpush1.msra.mxu0 0.0
  %1207 = vmatprep.subr.mxu0 0.0
  %1208 = vmatpush1.msra.mxu0 0.0
  %1209 = vmatprep.subr.mxu0 0.0
  %1210 = vmatpush1.msra.mxu0 0.0
  %1211 = vmatprep.subr.mxu0 0.0
  %1212 = vmatpush1.msra.mxu0 0.0
  %1213 = vmatprep.subr.mxu0 0.0
  %1214 = vmatpush1.msra.mxu0 0.0
  %1215 = vmatprep.subr.mxu0 0.0
  %1216 = vmatpush1.msra.mxu0 0.0
  %1217 = vmatprep.subr.mxu0 0.0
  %1218 = vmatpush1.msra.mxu0 0.0
  %1219 = vmatprep.subr.mxu0 0.0
  %1220 = vmatpush1.msra.mxu0 %v1189
  %1221 = vmatprep.subr.mxu0 0.0
  %1222 = vmatpush1.msra.mxu0 %v1165
  %1223 = vmatprep.subr.mxu0 0.0
  %1224 = vmatpush2.msra.mxu0 0.0
  %1225 = vmatprep.subr.mxu0 0.0
  %1226 = vmatpush2.msra.mxu0 0.0
  %1227 = vmatprep.subr.mxu0 0.0
  %1228 = vmatpush2.msra.mxu0 0.0
  %1229 = vmatprep.subr.mxu0 0.0
  %1230 = vmatpush2.msra.mxu0 0.0
  %1231 = vmatprep.subr.mxu0 0.0
  %1232 = vmatpush2.msra.mxu0 0.0
  %1233 = vmatprep.subr.mxu0 0.0
  %1234 = vmatpush2.msra.mxu0 0.0
  %1235 = vmatprep.subr.mxu0 0.0
  %1236 = vmatpush2.msra.mxu0 0.0
  %1237 = vmatprep.subr.mxu0 0.0
  %1238 = vmatpush2.msra.mxu0 0.0
  %1239 = vmatprep.subr.mxu0 0.0
  %1240 = vmatpush2.msra.mxu0 0.0
  %1241 = vmatprep.subr.mxu0 0.0
  %1242 = vmatpush2.msra.mxu0 0.0
  %1243 = vmatprep.subr.mxu0 0.0
  %1244 = vmatpush2.msra.mxu0 0.0
  %1245 = vmatprep.subr.mxu0 0.0
  %1246 = vmatpush2.msra.mxu0 0.0
  %1247 = vmatprep.subr.mxu0 0.0
  %1248 = vmatpush2.msra.mxu0 0.0
  %1249 = vmatprep.subr.mxu0 0.0
  %1250 = vmatpush2.msra.mxu0 0.0
  %1251 = vmatprep.subr.mxu0 0.0
  %1252 = vmatpush2.msra.mxu0 0.0
  %1253 = vmatprep.subr.mxu0 0.0
  %1254 = vmatpush2.msra.mxu0 0.0
  %1255 = vmatprep.mubr.f32.mxu0 0.0
  %1256 = vmatmul.mubr.f32.gmra.mxu0 %v1179
  %v1257 = vpop.f32.mrf.mxu0
  %v1258 = vadd.f32 0.0, %v1257
  %v1259 = vpop.f32.mrf.mxu0
  %1260 = vmatprep.mubr.f32.mxu0 0.0
  %1261 = vmatmul.mubr.f32.gmra.mxu0 %v1182
  %v1262 = vpop.f32.mrf.mxu0
  %v1263 = vadd.f32 0.0, %v1262
  %v1264 = vpop.f32.mrf.mxu0
  %1265 = vmatprep.mubr.f32.mxu0 0.0
  %1266 = vmatmul.mubr.f32.gmra.mxu0 %v1185
  %v1267 = vpop.f32.mrf.mxu0
  %v1268 = vadd.f32 0.0, %v1267
  %v1269 = vpop.f32.mrf.mxu0
  %1270 = vdwg.mxu0
  %v1272 = vsel %vm1177, %v1089, 0
  %v1275 = vsel %vm1177, %v1090, 0
  %v1278 = vsel %vm1177, %v1091, 0
  %v1281 = vsel %vm1187, %v1086, 0
  %1283 = vmatprep.subr.mxu0 0.0
  %1284 = vmatpush1.msra.mxu0 0.0
  %1285 = vmatprep.subr.mxu0 0.0
  %1286 = vmatpush1.msra.mxu0 0.0
  %1287 = vmatprep.subr.mxu0 0.0
  %1288 = vmatpush1.msra.mxu0 0.0
  %1289 = vmatprep.subr.mxu0 0.0
  %1290 = vmatpush1.msra.mxu0 0.0
  %1291 = vmatprep.subr.mxu0 0.0
  %1292 = vmatpush1.msra.mxu0 0.0
  %1293 = vmatprep.subr.mxu0 0.0
  %1294 = vmatpush1.msra.mxu0 0.0
  %1295 = vmatprep.subr.mxu0 0.0
  %1296 = vmatpush1.msra.mxu0 0.0
  %1297 = vmatprep.subr.mxu0 0.0
  %1298 = vmatpush1.msra.mxu0 0.0
  %1299 = vmatprep.subr.mxu0 0.0
  %1300 = vmatpush1.msra.mxu0 0.0
  %1301 = vmatprep.subr.mxu0 0.0
  %1302 = vmatpush1.msra.mxu0 0.0
  %1303 = vmatprep.subr.mxu0 0.0
  %1304 = vmatpush1.msra.mxu0 0.0
  %1305 = vmatprep.subr.mxu0 0.0
  %1306 = vmatpush1.msra.mxu0 0.0
  %1307 = vmatprep.subr.mxu0 0.0
  %1308 = vmatpush1.msra.mxu0 0.0
  %1309 = vmatprep.subr.mxu0 0.0
  %1310 = vmatpush1.msra.mxu0 0.0
  %1311 = vmatprep.subr.mxu0 0.0
  %1312 = vmatpush1.msra.mxu0 %v1281
  %1313 = vmatprep.subr.mxu0 0.0
  %1314 = vmatpush1.msra.mxu0 %v1081
  %1315 = vmatprep.subr.mxu0 0.0
  %1316 = vmatpush2.msra.mxu0 0.0
  %1317 = vmatprep.subr.mxu0 0.0
  %1318 = vmatpush2.msra.mxu0 0.0
  %1319 = vmatprep.subr.mxu0 0.0
  %1320 = vmatpush2.msra.mxu0 0.0
  %1321 = vmatprep.subr.mxu0 0.0
  %1322 = vmatpush2.msra.mxu0 0.0
  %1323 = vmatprep.subr.mxu0 0.0
  %1324 = vmatpush2.msra.mxu0 0.0
  %1325 = vmatprep.subr.mxu0 0.0
  %1326 = vmatpush2.msra.mxu0 0.0
  %1327 = vmatprep.subr.mxu0 0.0
  %1328 = vmatpush2.msra.mxu0 0.0
  %1329 = vmatprep.subr.mxu0 0.0
  %1330 = vmatpush2.msra.mxu0 0.0
  %1331 = vmatprep.subr.mxu0 0.0
  %1332 = vmatpush2.msra.mxu0 0.0
  %1333 = vmatprep.subr.mxu0 0.0
  %1334 = vmatpush2.msra.mxu0 0.0
  %1335 = vmatprep.subr.mxu0 0.0
  %1336 = vmatpush2.msra.mxu0 0.0
  %1337 = vmatprep.subr.mxu0 0.0
  %1338 = vmatpush2.msra.mxu0 0.0
  %1339 = vmatprep.subr.mxu0 0.0
  %1340 = vmatpush2.msra.mxu0 0.0
  %1341 = vmatprep.subr.mxu0 0.0
  %1342 = vmatpush2.msra.mxu0 0.0
  %1343 = vmatprep.subr.mxu0 0.0
  %1344 = vmatpush2.msra.mxu0 0.0
  %1345 = vmatprep.subr.mxu0 0.0
  %1346 = vmatpush2.msra.mxu0 0.0
  %1347 = vmatprep.mubr.f32.mxu0 0.0
  %1348 = vmatmul.mubr.f32.gmra.mxu0 %v1272
  %v1349 = vpop.f32.mrf.mxu0
  %v1350 = vadd.f32 %v1258, %v1349
  %v1351 = vpop.f32.mrf.mxu0
  %1352 = vmatprep.mubr.f32.mxu0 0.0
  %1353 = vmatmul.mubr.f32.gmra.mxu0 %v1275
  %v1354 = vpop.f32.mrf.mxu0
  %v1355 = vadd.f32 %v1263, %v1354
  %v1356 = vpop.f32.mrf.mxu0
  %1357 = vmatprep.mubr.f32.mxu0 0.0
  %1358 = vmatmul.mubr.f32.gmra.mxu0 %v1278
  %v1359 = vpop.f32.mrf.mxu0
  %v1360 = vadd.f32 %v1268, %v1359
  %v1361 = vpop.f32.mrf.mxu0
  %1362 = vdwg.mxu0
  %s1363 = scalar_lea.vmem %s6, 32
  %v1364 = vld [vmem:[%s1363] sm:$0xff]
  %v1365 = vld [vmem:[%s1363 + $0x8] sm:$0x1]
  %v1367 = vsel %vm1010, %v1365, 0
  %1369 = vmatprep.subr.mxu0 0.0
  %1370 = vmatpush1.msra.mxu0 0.0
  %1371 = vmatprep.subr.mxu0 0.0
  %1372 = vmatpush1.msra.mxu0 0.0
  %1373 = vmatprep.subr.mxu0 0.0
  %1374 = vmatpush1.msra.mxu0 0.0
  %1375 = vmatprep.subr.mxu0 0.0
  %1376 = vmatpush1.msra.mxu0 0.0
  %1377 = vmatprep.subr.mxu0 0.0
  %1378 = vmatpush1.msra.mxu0 0.0
  %1379 = vmatprep.subr.mxu0 0.0
  %1380 = vmatpush1.msra.mxu0 0.0
  %1381 = vmatprep.subr.mxu0 0.0
  %1382 = vmatpush1.msra.mxu0 0.0
  %1383 = vmatprep.subr.mxu0 0.0
  %1384 = vmatpush1.msra.mxu0 0.0
  %1385 = vmatprep.subr.mxu0 0.0
  %1386 = vmatpush1.msra.mxu0 0.0
  %1387 = vmatprep.subr.mxu0 0.0
  %1388 = vmatpush1.msra.mxu0 0.0
  %1389 = vmatprep.subr.mxu0 0.0
  %1390 = vmatpush1.msra.mxu0 0.0
  %1391 = vmatprep.subr.mxu0 0.0
  %1392 = vmatpush1.msra.mxu0 0.0
  %1393 = vmatprep.subr.mxu0 0.0
  %1394 = vmatpush1.msra.mxu0 0.0
  %1395 = vmatprep.subr.mxu0 0.0
  %1396 = vmatpush1.msra.mxu0 0.0
  %1397 = vmatprep.subr.mxu0 0.0
  %1398 = vmatpush1.msra.mxu0 %v1367
  %1399 = vmatprep.subr.mxu0 0.0
  %1400 = vmatpush1.msra.mxu0 %v1364
  %1401 = vmatprep.subr.mxu0 0.0
  %1402 = vmatpush2.msra.mxu0 0.0
  %1403 = vmatprep.subr.mxu0 0.0
  %1404 = vmatpush2.msra.mxu0 0.0
  %1405 = vmatprep.subr.mxu0 0.0
  %1406 = vmatpush2.msra.mxu0 0.0
  %1407 = vmatprep.subr.mxu0 0.0
  %1408 = vmatpush2.msra.mxu0 0.0
  %1409 = vmatprep.subr.mxu0 0.0
  %1410 = vmatpush2.msra.mxu0 0.0
  %1411 = vmatprep.subr.mxu0 0.0
  %1412 = vmatpush2.msra.mxu0 0.0
  %1413 = vmatprep.subr.mxu0 0.0
  %1414 = vmatpush2.msra.mxu0 0.0
  %1415 = vmatprep.subr.mxu0 0.0
  %1416 = vmatpush2.msra.mxu0 0.0
  %1417 = vmatprep.subr.mxu0 0.0
  %1418 = vmatpush2.msra.mxu0 0.0
  %1419 = vmatprep.subr.mxu0 0.0
  %1420 = vmatpush2.msra.mxu0 0.0
  %1421 = vmatprep.subr.mxu0 0.0
  %1422 = vmatpush2.msra.mxu0 0.0
  %1423 = vmatprep.subr.mxu0 0.0
  %1424 = vmatpush2.msra.mxu0 0.0
  %1425 = vmatprep.subr.mxu0 0.0
  %1426 = vmatpush2.msra.mxu0 0.0
  %1427 = vmatprep.subr.mxu0 0.0
  %1428 = vmatpush2.msra.mxu0 0.0
  %1429 = vmatprep.subr.mxu0 0.0
  %1430 = vmatpush2.msra.mxu0 0.0
  %1431 = vmatprep.subr.mxu0 0.0
  %1432 = vmatpush2.msra.mxu0 0.0
  %1433 = vmatprep.mubr.f32.mxu0 0.0
  %1434 = vmatmul.mubr.f32.gmra.mxu0 %v1005
  %v1435 = vpop.f32.mrf.mxu0
  %v1436 = vadd.f32 0.0, %v1435
  %v1437 = vpop.f32.mrf.mxu0
  %1438 = vmatprep.mubr.f32.mxu0 0.0
  %1439 = vmatmul.mubr.f32.gmra.mxu0 %v1008
  %v1440 = vpop.f32.mrf.mxu0
  %v1441 = vadd.f32 0.0, %v1440
  %v1442 = vpop.f32.mrf.mxu0
  %1443 = vdwg.mxu0
  %s1444 = scalar_lea.vmem %s7, 48
  %v1445 = vld [vmem:[%s1444] sm:$0xff]
  %v1446 = vld [vmem:[%s1444 + $0x8] sm:$0xff]
  %v1447 = vld [vmem:[%s1444 + $0x10] sm:$0xff]
  %v1449 = vsel %vm1177, %v1445, 0
  %v1452 = vsel %vm1177, %v1446, 0
  %v1455 = vsel %vm1177, %v1447, 0
  %v1458 = vsel %vm1187, %v1441, 0
  %1460 = vmatprep.subr.mxu0 0.0
  %1461 = vmatpush1.msra.mxu0 0.0
  %1462 = vmatprep.subr.mxu0 0.0
  %1463 = vmatpush1.msra.mxu0 0.0
  %1464 = vmatprep.subr.mxu0 0.0
  %1465 = vmatpush1.msra.mxu0 0.0
  %1466 = vmatprep.subr.mxu0 0.0
  %1467 = vmatpush1.msra.mxu0 0.0
  %1468 = vmatprep.subr.mxu0 0.0
  %1469 = vmatpush1.msra.mxu0 0.0
  %1470 = vmatprep.subr.mxu0 0.0
  %1471 = vmatpush1.msra.mxu0 0.0
  %1472 = vmatprep.subr.mxu0 0.0
  %1473 = vmatpush1.msra.mxu0 0.0
  %1474 = vmatprep.subr.mxu0 0.0
  %1475 = vmatpush1.msra.mxu0 0.0
  %1476 = vmatprep.subr.mxu0 0.0
  %1477 = vmatpush1.msra.mxu0 0.0
  %1478 = vmatprep.subr.mxu0 0.0
  %1479 = vmatpush1.msra.mxu0 0.0
  %1480 = vmatprep.subr.mxu0 0.0
  %1481 = vmatpush1.msra.mxu0 0.0
  %1482 = vmatprep.subr.mxu0 0.0
  %1483 = vmatpush1.msra.mxu0 0.0
  %1484 = vmatprep.subr.mxu0 0.0
  %1485 = vmatpush1.msra.mxu0 0.0
  %1486 = vmatprep.subr.mxu0 0.0
  %1487 = vmatpush1.msra.mxu0 0.0
  %1488 = vmatprep.subr.mxu0 0.0
  %1489 = vmatpush1.msra.mxu0 %v1458
  %1490 = vmatprep.subr.mxu0 0.0
  %1491 = vmatpush1.msra.mxu0 %v1436
  %1492 = vmatprep.subr.mxu0 0.0
  %1493 = vmatpush2.msra.mxu0 0.0
  %1494 = vmatprep.subr.mxu0 0.0
  %1495 = vmatpush2.msra.mxu0 0.0
  %1496 = vmatprep.subr.mxu0 0.0
  %1497 = vmatpush2.msra.mxu0 0.0
  %1498 = vmatprep.subr.mxu0 0.0
  %1499 = vmatpush2.msra.mxu0 0.0
  %1500 = vmatprep.subr.mxu0 0.0
  %1501 = vmatpush2.msra.mxu0 0.0
  %1502 = vmatprep.subr.mxu0 0.0
  %1503 = vmatpush2.msra.mxu0 0.0
  %1504 = vmatprep.subr.mxu0 0.0
  %1505 = vmatpush2.msra.mxu0 0.0
  %1506 = vmatprep.subr.mxu0 0.0
  %1507 = vmatpush2.msra.mxu0 0.0
  %1508 = vmatprep.subr.mxu0 0.0
  %1509 = vmatpush2.msra.mxu0 0.0
  %1510 = vmatprep.subr.mxu0 0.0
  %1511 = vmatpush2.msra.mxu0 0.0
  %1512 = vmatprep.subr.mxu0 0.0
  %1513 = vmatpush2.msra.mxu0 0.0
  %1514 = vmatprep.subr.mxu0 0.0
  %1515 = vmatpush2.msra.mxu0 0.0
  %1516 = vmatprep.subr.mxu0 0.0
  %1517 = vmatpush2.msra.mxu0 0.0
  %1518 = vmatprep.subr.mxu0 0.0
  %1519 = vmatpush2.msra.mxu0 0.0
  %1520 = vmatprep.subr.mxu0 0.0
  %1521 = vmatpush2.msra.mxu0 0.0
  %1522 = vmatprep.subr.mxu0 0.0
  %1523 = vmatpush2.msra.mxu0 0.0
  %1524 = vmatprep.mubr.f32.mxu0 0.0
  %1525 = vmatmul.mubr.f32.gmra.mxu0 %v1449
  %v1526 = vpop.f32.mrf.mxu0
  %v1527 = vadd.f32 0.0, %v1526
  %v1528 = vpop.f32.mrf.mxu0
  %1529 = vmatprep.mubr.f32.mxu0 0.0
  %1530 = vmatmul.mubr.f32.gmra.mxu0 %v1452
  %v1531 = vpop.f32.mrf.mxu0
  %v1532 = vadd.f32 0.0, %v1531
  %v1533 = vpop.f32.mrf.mxu0
  %1534 = vmatprep.mubr.f32.mxu0 0.0
  %1535 = vmatmul.mubr.f32.gmra.mxu0 %v1455
  %v1536 = vpop.f32.mrf.mxu0
  %v1537 = vadd.f32 0.0, %v1536
  %v1538 = vpop.f32.mrf.mxu0
  %1539 = vdwg.mxu0
  %v1540 = vadd.f32 %v1350, %v1527
  %v1541 = vadd.f32 %v1355, %v1532
  %v1542 = vadd.f32 %v1360, %v1537
  %s1543 = scalar_lea.vmem %s6, 48
  %v1544 = vld [vmem:[%s1543] sm:$0xff]
  %v1545 = vld [vmem:[%s1543 + $0x8] sm:$0x1]
  %v1547 = vsel %vm1010, %v1545, 0
  %1549 = vmatprep.subr.mxu0 0.0
  %1550 = vmatpush1.msra.mxu0 0.0
  %1551 = vmatprep.subr.mxu0 0.0
  %1552 = vmatpush1.msra.mxu0 0.0
  %1553 = vmatprep.subr.mxu0 0.0
  %1554 = vmatpush1.msra.mxu0 0.0
  %1555 = vmatprep.subr.mxu0 0.0
  %1556 = vmatpush1.msra.mxu0 0.0
  %1557 = vmatprep.subr.mxu0 0.0
  %1558 = vmatpush1.msra.mxu0 0.0
  %1559 = vmatprep.subr.mxu0 0.0
  %1560 = vmatpush1.msra.mxu0 0.0
  %1561 = vmatprep.subr.mxu0 0.0
  %1562 = vmatpush1.msra.mxu0 0.0
  %1563 = vmatprep.subr.mxu0 0.0
  %1564 = vmatpush1.msra.mxu0 0.0
  %1565 = vmatprep.subr.mxu0 0.0
  %1566 = vmatpush1.msra.mxu0 0.0
  %1567 = vmatprep.subr.mxu0 0.0
  %1568 = vmatpush1.msra.mxu0 0.0
  %1569 = vmatprep.subr.mxu0 0.0
  %1570 = vmatpush1.msra.mxu0 0.0
  %1571 = vmatprep.subr.mxu0 0.0
  %1572 = vmatpush1.msra.mxu0 0.0
  %1573 = vmatprep.subr.mxu0 0.0
  %1574 = vmatpush1.msra.mxu0 0.0
  %1575 = vmatprep.subr.mxu0 0.0
  %1576 = vmatpush1.msra.mxu0 0.0
  %1577 = vmatprep.subr.mxu0 0.0
  %1578 = vmatpush1.msra.mxu0 %v1547
  %1579 = vmatprep.subr.mxu0 0.0
  %1580 = vmatpush1.msra.mxu0 %v1544
  %1581 = vmatprep.subr.mxu0 0.0
  %1582 = vmatpush2.msra.mxu0 0.0
  %1583 = vmatprep.subr.mxu0 0.0
  %1584 = vmatpush2.msra.mxu0 0.0
  %1585 = vmatprep.subr.mxu0 0.0
  %1586 = vmatpush2.msra.mxu0 0.0
  %1587 = vmatprep.subr.mxu0 0.0
  %1588 = vmatpush2.msra.mxu0 0.0
  %1589 = vmatprep.subr.mxu0 0.0
  %1590 = vmatpush2.msra.mxu0 0.0
  %1591 = vmatprep.subr.mxu0 0.0
  %1592 = vmatpush2.msra.mxu0 0.0
  %1593 = vmatprep.subr.mxu0 0.0
  %1594 = vmatpush2.msra.mxu0 0.0
  %1595 = vmatprep.subr.mxu0 0.0
  %1596 = vmatpush2.msra.mxu0 0.0
  %1597 = vmatprep.subr.mxu0 0.0
  %1598 = vmatpush2.msra.mxu0 0.0
  %1599 = vmatprep.subr.mxu0 0.0
  %1600 = vmatpush2.msra.mxu0 0.0
  %1601 = vmatprep.subr.mxu0 0.0
  %1602 = vmatpush2.msra.mxu0 0.0
  %1603 = vmatprep.subr.mxu0 0.0
  %1604 = vmatpush2.msra.mxu0 0.0
  %1605 = vmatprep.subr.mxu0 0.0
  %1606 = vmatpush2.msra.mxu0 0.0
  %1607 = vmatprep.subr.mxu0 0.0
  %1608 = vmatpush2.msra.mxu0 0.0
  %1609 = vmatprep.subr.mxu0 0.0
  %1610 = vmatpush2.msra.mxu0 0.0
  %1611 = vmatprep.subr.mxu0 0.0
  %1612 = vmatpush2.msra.mxu0 0.0
  %1613 = vmatprep.mubr.f32.mxu0 0.0
  %1614 = vmatmul.mubr.f32.gmra.mxu0 %v1005
  %v1615 = vpop.f32.mrf.mxu0
  %v1616 = vadd.f32 0.0, %v1615
  %v1617 = vpop.f32.mrf.mxu0
  %1618 = vmatprep.mubr.f32.mxu0 0.0
  %1619 = vmatmul.mubr.f32.gmra.mxu0 %v1008
  %v1620 = vpop.f32.mrf.mxu0
  %v1621 = vadd.f32 0.0, %v1620
  %v1622 = vpop.f32.mrf.mxu0
  %1623 = vdwg.mxu0
  %s1624 = scalar_lea.vmem %s7, 72
  %v1625 = vld [vmem:[%s1624] sm:$0xff]
  %v1626 = vld [vmem:[%s1624 + $0x8] sm:$0xff]
  %v1627 = vld [vmem:[%s1624 + $0x10] sm:$0xff]
  %v1629 = vsel %vm1177, %v1625, 0
  %v1632 = vsel %vm1177, %v1626, 0
  %v1635 = vsel %vm1177, %v1627, 0
  %v1638 = vsel %vm1187, %v1621, 0
  %1640 = vmatprep.subr.mxu0 0.0
  %1641 = vmatpush1.msra.mxu0 0.0
  %1642 = vmatprep.subr.mxu0 0.0
  %1643 = vmatpush1.msra.mxu0 0.0
  %1644 = vmatprep.subr.mxu0 0.0
  %1645 = vmatpush1.msra.mxu0 0.0
  %1646 = vmatprep.subr.mxu0 0.0
  %1647 = vmatpush1.msra.mxu0 0.0
  %1648 = vmatprep.subr.mxu0 0.0
  %1649 = vmatpush1.msra.mxu0 0.0
  %1650 = vmatprep.subr.mxu0 0.0
  %1651 = vmatpush1.msra.mxu0 0.0
  %1652 = vmatprep.subr.mxu0 0.0
  %1653 = vmatpush1.msra.mxu0 0.0
  %1654 = vmatprep.subr.mxu0 0.0
  %1655 = vmatpush1.msra.mxu0 0.0
  %1656 = vmatprep.subr.mxu0 0.0
  %1657 = vmatpush1.msra.mxu0 0.0
  %1658 = vmatprep.subr.mxu0 0.0
  %1659 = vmatpush1.msra.mxu0 0.0
  %1660 = vmatprep.subr.mxu0 0.0
  %1661 = vmatpush1.msra.mxu0 0.0
  %1662 = vmatprep.subr.mxu0 0.0
  %1663 = vmatpush1.msra.mxu0 0.0
  %1664 = vmatprep.subr.mxu0 0.0
  %1665 = vmatpush1.msra.mxu0 0.0
  %1666 = vmatprep.subr.mxu0 0.0
  %1667 = vmatpush1.msra.mxu0 0.0
  %1668 = vmatprep.subr.mxu0 0.0
  %1669 = vmatpush1.msra.mxu0 %v1638
  %1670 = vmatprep.subr.mxu0 0.0
  %1671 = vmatpush1.msra.mxu0 %v1616
  %1672 = vmatprep.subr.mxu0 0.0
  %1673 = vmatpush2.msra.mxu0 0.0
  %1674 = vmatprep.subr.mxu0 0.0
  %1675 = vmatpush2.msra.mxu0 0.0
  %1676 = vmatprep.subr.mxu0 0.0
  %1677 = vmatpush2.msra.mxu0 0.0
  %1678 = vmatprep.subr.mxu0 0.0
  %1679 = vmatpush2.msra.mxu0 0.0
  %1680 = vmatprep.subr.mxu0 0.0
  %1681 = vmatpush2.msra.mxu0 0.0
  %1682 = vmatprep.subr.mxu0 0.0
  %1683 = vmatpush2.msra.mxu0 0.0
  %1684 = vmatprep.subr.mxu0 0.0
  %1685 = vmatpush2.msra.mxu0 0.0
  %1686 = vmatprep.subr.mxu0 0.0
  %1687 = vmatpush2.msra.mxu0 0.0
  %1688 = vmatprep.subr.mxu0 0.0
  %1689 = vmatpush2.msra.mxu0 0.0
  %1690 = vmatprep.subr.mxu0 0.0
  %1691 = vmatpush2.msra.mxu0 0.0
  %1692 = vmatprep.subr.mxu0 0.0
  %1693 = vmatpush2.msra.mxu0 0.0
  %1694 = vmatprep.subr.mxu0 0.0
  %1695 = vmatpush2.msra.mxu0 0.0
  %1696 = vmatprep.subr.mxu0 0.0
  %1697 = vmatpush2.msra.mxu0 0.0
  %1698 = vmatprep.subr.mxu0 0.0
  %1699 = vmatpush2.msra.mxu0 0.0
  %1700 = vmatprep.subr.mxu0 0.0
  %1701 = vmatpush2.msra.mxu0 0.0
  %1702 = vmatprep.subr.mxu0 0.0
  %1703 = vmatpush2.msra.mxu0 0.0
  %1704 = vmatprep.mubr.f32.mxu0 0.0
  %1705 = vmatmul.mubr.f32.gmra.mxu0 %v1629
  %v1706 = vpop.f32.mrf.mxu0
  %v1707 = vadd.f32 0.0, %v1706
  %v1708 = vpop.f32.mrf.mxu0
  %1709 = vmatprep.mubr.f32.mxu0 0.0
  %1710 = vmatmul.mubr.f32.gmra.mxu0 %v1632
  %v1711 = vpop.f32.mrf.mxu0
  %v1712 = vadd.f32 0.0, %v1711
  %v1713 = vpop.f32.mrf.mxu0
  %1714 = vmatprep.mubr.f32.mxu0 0.0
  %1715 = vmatmul.mubr.f32.gmra.mxu0 %v1635
  %v1716 = vpop.f32.mrf.mxu0
  %v1717 = vadd.f32 0.0, %v1716
  %v1718 = vpop.f32.mrf.mxu0
  %1719 = vdwg.mxu0
  %v1720 = vadd.f32 %v1540, %v1707
  %v1721 = vadd.f32 %v1541, %v1712
  %v1722 = vadd.f32 %v1542, %v1717
  %s1723 = scalar_lea.vmem %s6, 64
  %v1724 = vld [vmem:[%s1723] sm:$0xff]
  %v1725 = vld [vmem:[%s1723 + $0x8] sm:$0x1]
  %v1727 = vsel %vm1010, %v1725, 0
  %1729 = vmatprep.subr.mxu0 0.0
  %1730 = vmatpush1.msra.mxu0 0.0
  %1731 = vmatprep.subr.mxu0 0.0
  %1732 = vmatpush1.msra.mxu0 0.0
  %1733 = vmatprep.subr.mxu0 0.0
  %1734 = vmatpush1.msra.mxu0 0.0
  %1735 = vmatprep.subr.mxu0 0.0
  %1736 = vmatpush1.msra.mxu0 0.0
  %1737 = vmatprep.subr.mxu0 0.0
  %1738 = vmatpush1.msra.mxu0 0.0
  %1739 = vmatprep.subr.mxu0 0.0
  %1740 = vmatpush1.msra.mxu0 0.0
  %1741 = vmatprep.subr.mxu0 0.0
  %1742 = vmatpush1.msra.mxu0 0.0
  %1743 = vmatprep.subr.mxu0 0.0
  %1744 = vmatpush1.msra.mxu0 0.0
  %1745 = vmatprep.subr.mxu0 0.0
  %1746 = vmatpush1.msra.mxu0 0.0
  %1747 = vmatprep.subr.mxu0 0.0
  %1748 = vmatpush1.msra.mxu0 0.0
  %1749 = vmatprep.subr.mxu0 0.0
  %1750 = vmatpush1.msra.mxu0 0.0
  %1751 = vmatprep.subr.mxu0 0.0
  %1752 = vmatpush1.msra.mxu0 0.0
  %1753 = vmatprep.subr.mxu0 0.0
  %1754 = vmatpush1.msra.mxu0 0.0
  %1755 = vmatprep.subr.mxu0 0.0
  %1756 = vmatpush1.msra.mxu0 0.0
  %1757 = vmatprep.subr.mxu0 0.0
  %1758 = vmatpush1.msra.mxu0 %v1727
  %1759 = vmatprep.subr.mxu0 0.0
  %1760 = vmatpush1.msra.mxu0 %v1724
  %1761 = vmatprep.subr.mxu0 0.0
  %1762 = vmatpush2.msra.mxu0 0.0
  %1763 = vmatprep.subr.mxu0 0.0
  %1764 = vmatpush2.msra.mxu0 0.0
  %1765 = vmatprep.subr.mxu0 0.0
  %1766 = vmatpush2.msra.mxu0 0.0
  %1767 = vmatprep.subr.mxu0 0.0
  %1768 = vmatpush2.msra.mxu0 0.0
  %1769 = vmatprep.subr.mxu0 0.0
  %1770 = vmatpush2.msra.mxu0 0.0
  %1771 = vmatprep.subr.mxu0 0.0
  %1772 = vmatpush2.msra.mxu0 0.0
  %1773 = vmatprep.subr.mxu0 0.0
  %1774 = vmatpush2.msra.mxu0 0.0
  %1775 = vmatprep.subr.mxu0 0.0
  %1776 = vmatpush2.msra.mxu0 0.0
  %1777 = vmatprep.subr.mxu0 0.0
  %1778 = vmatpush2.msra.mxu0 0.0
  %1779 = vmatprep.subr.mxu0 0.0
  %1780 = vmatpush2.msra.mxu0 0.0
  %1781 = vmatprep.subr.mxu0 0.0
  %1782 = vmatpush2.msra.mxu0 0.0
  %1783 = vmatprep.subr.mxu0 0.0
  %1784 = vmatpush2.msra.mxu0 0.0
  %1785 = vmatprep.subr.mxu0 0.0
  %1786 = vmatpush2.msra.mxu0 0.0
  %1787 = vmatprep.subr.mxu0 0.0
  %1788 = vmatpush2.msra.mxu0 0.0
  %1789 = vmatprep.subr.mxu0 0.0
  %1790 = vmatpush2.msra.mxu0 0.0
  %1791 = vmatprep.subr.mxu0 0.0
  %1792 = vmatpush2.msra.mxu0 0.0
  %1793 = vmatprep.mubr.f32.mxu0 0.0
  %1794 = vmatmul.mubr.f32.gmra.mxu0 %v1005
  %v1795 = vpop.f32.mrf.mxu0
  %v1796 = vadd.f32 0.0, %v1795
  %v1797 = vpop.f32.mrf.mxu0
  %1798 = vmatprep.mubr.f32.mxu0 0.0
  %1799 = vmatmul.mubr.f32.gmra.mxu0 %v1008
  %v1800 = vpop.f32.mrf.mxu0
  %v1801 = vadd.f32 0.0, %v1800
  %v1802 = vpop.f32.mrf.mxu0
  %1803 = vdwg.mxu0
  %s1804 = scalar_lea.vmem %s7, 96
  %v1805 = vld [vmem:[%s1804] sm:$0xff]
  %v1806 = vld [vmem:[%s1804 + $0x8] sm:$0xff]
  %v1807 = vld [vmem:[%s1804 + $0x10] sm:$0xff]
  %v1809 = vsel %vm1177, %v1805, 0
  %v1812 = vsel %vm1177, %v1806, 0
  %v1815 = vsel %vm1177, %v1807, 0
  %v1818 = vsel %vm1187, %v1801, 0
  %1820 = vmatprep.subr.mxu0 0.0
  %1821 = vmatpush1.msra.mxu0 0.0
  %1822 = vmatprep.subr.mxu0 0.0
  %1823 = vmatpush1.msra.mxu0 0.0
  %1824 = vmatprep.subr.mxu0 0.0
  %1825 = vmatpush1.msra.mxu0 0.0
  %1826 = vmatprep.subr.mxu0 0.0
  %1827 = vmatpush1.msra.mxu0 0.0
  %1828 = vmatprep.subr.mxu0 0.0
  %1829 = vmatpush1.msra.mxu0 0.0
  %1830 = vmatprep.subr.mxu0 0.0
  %1831 = vmatpush1.msra.mxu0 0.0
  %1832 = vmatprep.subr.mxu0 0.0
  %1833 = vmatpush1.msra.mxu0 0.0
  %1834 = vmatprep.subr.mxu0 0.0
  %1835 = vmatpush1.msra.mxu0 0.0
  %1836 = vmatprep.subr.mxu0 0.0
  %1837 = vmatpush1.msra.mxu0 0.0
  %1838 = vmatprep.subr.mxu0 0.0
  %1839 = vmatpush1.msra.mxu0 0.0
  %1840 = vmatprep.subr.mxu0 0.0
  %1841 = vmatpush1.msra.mxu0 0.0
  %1842 = vmatprep.subr.mxu0 0.0
  %1843 = vmatpush1.msra.mxu0 0.0
  %1844 = vmatprep.subr.mxu0 0.0
  %1845 = vmatpush1.msra.mxu0 0.0
  %1846 = vmatprep.subr.mxu0 0.0
  %1847 = vmatpush1.msra.mxu0 0.0
  %1848 = vmatprep.subr.mxu0 0.0
  %1849 = vmatpush1.msra.mxu0 %v1818
  %1850 = vmatprep.subr.mxu0 0.0
  %1851 = vmatpush1.msra.mxu0 %v1796
  %1852 = vmatprep.subr.mxu0 0.0
  %1853 = vmatpush2.msra.mxu0 0.0
  %1854 = vmatprep.subr.mxu0 0.0
  %1855 = vmatpush2.msra.mxu0 0.0
  %1856 = vmatprep.subr.mxu0 0.0
  %1857 = vmatpush2.msra.mxu0 0.0
  %1858 = vmatprep.subr.mxu0 0.0
  %1859 = vmatpush2.msra.mxu0 0.0
  %1860 = vmatprep.subr.mxu0 0.0
  %1861 = vmatpush2.msra.mxu0 0.0
  %1862 = vmatprep.subr.mxu0 0.0
  %1863 = vmatpush2.msra.mxu0 0.0
  %1864 = vmatprep.subr.mxu0 0.0
  %1865 = vmatpush2.msra.mxu0 0.0
  %1866 = vmatprep.subr.mxu0 0.0
  %1867 = vmatpush2.msra.mxu0 0.0
  %1868 = vmatprep.subr.mxu0 0.0
  %1869 = vmatpush2.msra.mxu0 0.0
  %1870 = vmatprep.subr.mxu0 0.0
  %1871 = vmatpush2.msra.mxu0 0.0
  %1872 = vmatprep.subr.mxu0 0.0
  %1873 = vmatpush2.msra.mxu0 0.0
  %1874 = vmatprep.subr.mxu0 0.0
  %1875 = vmatpush2.msra.mxu0 0.0
  %1876 = vmatprep.subr.mxu0 0.0
  %1877 = vmatpush2.msra.mxu0 0.0
  %1878 = vmatprep.subr.mxu0 0.0
  %1879 = vmatpush2.msra.mxu0 0.0
  %1880 = vmatprep.subr.mxu0 0.0
  %1881 = vmatpush2.msra.mxu0 0.0
  %1882 = vmatprep.subr.mxu0 0.0
  %1883 = vmatpush2.msra.mxu0 0.0
  %1884 = vmatprep.mubr.f32.mxu0 0.0
  %1885 = vmatmul.mubr.f32.gmra.mxu0 %v1809
  %v1886 = vpop.f32.mrf.mxu0
  %v1887 = vadd.f32 0.0, %v1886
  %v1888 = vpop.f32.mrf.mxu0
  %1889 = vmatprep.mubr.f32.mxu0 0.0
  %1890 = vmatmul.mubr.f32.gmra.mxu0 %v1812
  %v1891 = vpop.f32.mrf.mxu0
  %v1892 = vadd.f32 0.0, %v1891
  %v1893 = vpop.f32.mrf.mxu0
  %1894 = vmatprep.mubr.f32.mxu0 0.0
  %1895 = vmatmul.mubr.f32.gmra.mxu0 %v1815
  %v1896 = vpop.f32.mrf.mxu0
  %v1897 = vadd.f32 0.0, %v1896
  %v1898 = vpop.f32.mrf.mxu0
  %1899 = vdwg.mxu0
  %v1900 = vadd.f32 %v1720, %v1887
  %v1901 = vadd.f32 %v1721, %v1892
  %v1902 = vadd.f32 %v1722, %v1897
  %s1903 = scalar_lea.vmem %s6, 80
  %v1904 = vld [vmem:[%s1903] sm:$0xff]
  %v1905 = vld [vmem:[%s1903 + $0x8] sm:$0x1]
  %v1907 = vsel %vm1010, %v1905, 0
  %1909 = vmatprep.subr.mxu0 0.0
  %1910 = vmatpush1.msra.mxu0 0.0
  %1911 = vmatprep.subr.mxu0 0.0
  %1912 = vmatpush1.msra.mxu0 0.0
  %1913 = vmatprep.subr.mxu0 0.0
  %1914 = vmatpush1.msra.mxu0 0.0
  %1915 = vmatprep.subr.mxu0 0.0
  %1916 = vmatpush1.msra.mxu0 0.0
  %1917 = vmatprep.subr.mxu0 0.0
  %1918 = vmatpush1.msra.mxu0 0.0
  %1919 = vmatprep.subr.mxu0 0.0
  %1920 = vmatpush1.msra.mxu0 0.0
  %1921 = vmatprep.subr.mxu0 0.0
  %1922 = vmatpush1.msra.mxu0 0.0
  %1923 = vmatprep.subr.mxu0 0.0
  %1924 = vmatpush1.msra.mxu0 0.0
  %1925 = vmatprep.subr.mxu0 0.0
  %1926 = vmatpush1.msra.mxu0 0.0
  %1927 = vmatprep.subr.mxu0 0.0
  %1928 = vmatpush1.msra.mxu0 0.0
  %1929 = vmatprep.subr.mxu0 0.0
  %1930 = vmatpush1.msra.mxu0 0.0
  %1931 = vmatprep.subr.mxu0 0.0
  %1932 = vmatpush1.msra.mxu0 0.0
  %1933 = vmatprep.subr.mxu0 0.0
  %1934 = vmatpush1.msra.mxu0 0.0
  %1935 = vmatprep.subr.mxu0 0.0
  %1936 = vmatpush1.msra.mxu0 0.0
  %1937 = vmatprep.subr.mxu0 0.0
  %1938 = vmatpush1.msra.mxu0 %v1907
  %1939 = vmatprep.subr.mxu0 0.0
  %1940 = vmatpush1.msra.mxu0 %v1904
  %1941 = vmatprep.subr.mxu0 0.0
  %1942 = vmatpush2.msra.mxu0 0.0
  %1943 = vmatprep.subr.mxu0 0.0
  %1944 = vmatpush2.msra.mxu0 0.0
  %1945 = vmatprep.subr.mxu0 0.0
  %1946 = vmatpush2.msra.mxu0 0.0
  %1947 = vmatprep.subr.mxu0 0.0
  %1948 = vmatpush2.msra.mxu0 0.0
  %1949 = vmatprep.subr.mxu0 0.0
  %1950 = vmatpush2.msra.mxu0 0.0
  %1951 = vmatprep.subr.mxu0 0.0
  %1952 = vmatpush2.msra.mxu0 0.0
  %1953 = vmatprep.subr.mxu0 0.0
  %1954 = vmatpush2.msra.mxu0 0.0
  %1955 = vmatprep.subr.mxu0 0.0
  %1956 = vmatpush2.msra.mxu0 0.0
  %1957 = vmatprep.subr.mxu0 0.0
  %1958 = vmatpush2.msra.mxu0 0.0
  %1959 = vmatprep.subr.mxu0 0.0
  %1960 = vmatpush2.msra.mxu0 0.0
  %1961 = vmatprep.subr.mxu0 0.0
  %1962 = vmatpush2.msra.mxu0 0.0
  %1963 = vmatprep.subr.mxu0 0.0
  %1964 = vmatpush2.msra.mxu0 0.0
  %1965 = vmatprep.subr.mxu0 0.0
  %1966 = vmatpush2.msra.mxu0 0.0
  %1967 = vmatprep.subr.mxu0 0.0
  %1968 = vmatpush2.msra.mxu0 0.0
  %1969 = vmatprep.subr.mxu0 0.0
  %1970 = vmatpush2.msra.mxu0 0.0
  %1971 = vmatprep.subr.mxu0 0.0
  %1972 = vmatpush2.msra.mxu0 0.0
  %1973 = vmatprep.mubr.f32.mxu0 0.0
  %1974 = vmatmul.mubr.f32.gmra.mxu0 %v1005
  %v1975 = vpop.f32.mrf.mxu0
  %v1976 = vadd.f32 0.0, %v1975
  %v1977 = vpop.f32.mrf.mxu0
  %1978 = vmatprep.mubr.f32.mxu0 0.0
  %1979 = vmatmul.mubr.f32.gmra.mxu0 %v1008
  %v1980 = vpop.f32.mrf.mxu0
  %v1981 = vadd.f32 0.0, %v1980
  %v1982 = vpop.f32.mrf.mxu0
  %1983 = vdwg.mxu0
  %s1984 = scalar_lea.vmem %s7, 120
  %v1985 = vld [vmem:[%s1984] sm:$0xff]
  %v1986 = vld [vmem:[%s1984 + $0x8] sm:$0xff]
  %v1987 = vld [vmem:[%s1984 + $0x10] sm:$0xff]
  %v1989 = vsel %vm1177, %v1985, 0
  %v1992 = vsel %vm1177, %v1986, 0
  %v1995 = vsel %vm1177, %v1987, 0
  %v1998 = vsel %vm1187, %v1981, 0
  %2000 = vmatprep.subr.mxu0 0.0
  %2001 = vmatpush1.msra.mxu0 0.0
  %2002 = vmatprep.subr.mxu0 0.0
  %2003 = vmatpush1.msra.mxu0 0.0
  %2004 = vmatprep.subr.mxu0 0.0
  %2005 = vmatpush1.msra.mxu0 0.0
  %2006 = vmatprep.subr.mxu0 0.0
  %2007 = vmatpush1.msra.mxu0 0.0
  %2008 = vmatprep.subr.mxu0 0.0
  %2009 = vmatpush1.msra.mxu0 0.0
  %2010 = vmatprep.subr.mxu0 0.0
  %2011 = vmatpush1.msra.mxu0 0.0
  %2012 = vmatprep.subr.mxu0 0.0
  %2013 = vmatpush1.msra.mxu0 0.0
  %2014 = vmatprep.subr.mxu0 0.0
  %2015 = vmatpush1.msra.mxu0 0.0
  %2016 = vmatprep.subr.mxu0 0.0
  %2017 = vmatpush1.msra.mxu0 0.0
  %2018 = vmatprep.subr.mxu0 0.0
  %2019 = vmatpush1.msra.mxu0 0.0
  %2020 = vmatprep.subr.mxu0 0.0
  %2021 = vmatpush1.msra.mxu0 0.0
  %2022 = vmatprep.subr.mxu0 0.0
  %2023 = vmatpush1.msra.mxu0 0.0
  %2024 = vmatprep.subr.mxu0 0.0
  %2025 = vmatpush1.msra.mxu0 0.0
  %2026 = vmatprep.subr.mxu0 0.0
  %2027 = vmatpush1.msra.mxu0 0.0
  %2028 = vmatprep.subr.mxu0 0.0
  %2029 = vmatpush1.msra.mxu0 %v1998
  %2030 = vmatprep.subr.mxu0 0.0
  %2031 = vmatpush1.msra.mxu0 %v1976
  %2032 = vmatprep.subr.mxu0 0.0
  %2033 = vmatpush2.msra.mxu0 0.0
  %2034 = vmatprep.subr.mxu0 0.0
  %2035 = vmatpush2.msra.mxu0 0.0
  %2036 = vmatprep.subr.mxu0 0.0
  %2037 = vmatpush2.msra.mxu0 0.0
  %2038 = vmatprep.subr.mxu0 0.0
  %2039 = vmatpush2.msra.mxu0 0.0
  %2040 = vmatprep.subr.mxu0 0.0
  %2041 = vmatpush2.msra.mxu0 0.0
  %2042 = vmatprep.subr.mxu0 0.0
  %2043 = vmatpush2.msra.mxu0 0.0
  %2044 = vmatprep.subr.mxu0 0.0
  %2045 = vmatpush2.msra.mxu0 0.0
  %2046 = vmatprep.subr.mxu0 0.0
  %2047 = vmatpush2.msra.mxu0 0.0
  %2048 = vmatprep.subr.mxu0 0.0
  %2049 = vmatpush2.msra.mxu0 0.0
  %2050 = vmatprep.subr.mxu0 0.0
  %2051 = vmatpush2.msra.mxu0 0.0
  %2052 = vmatprep.subr.mxu0 0.0
  %2053 = vmatpush2.msra.mxu0 0.0
  %2054 = vmatprep.subr.mxu0 0.0
  %2055 = vmatpush2.msra.mxu0 0.0
  %2056 = vmatprep.subr.mxu0 0.0
  %2057 = vmatpush2.msra.mxu0 0.0
  %2058 = vmatprep.subr.mxu0 0.0
  %2059 = vmatpush2.msra.mxu0 0.0
  %2060 = vmatprep.subr.mxu0 0.0
  %2061 = vmatpush2.msra.mxu0 0.0
  %2062 = vmatprep.subr.mxu0 0.0
  %2063 = vmatpush2.msra.mxu0 0.0
  %2064 = vmatprep.mubr.f32.mxu0 0.0
  %2065 = vmatmul.mubr.f32.gmra.mxu0 %v1989
  %v2066 = vpop.f32.mrf.mxu0
  %v2067 = vadd.f32 0.0, %v2066
  %v2068 = vpop.f32.mrf.mxu0
  %2069 = vmatprep.mubr.f32.mxu0 0.0
  %2070 = vmatmul.mubr.f32.gmra.mxu0 %v1992
  %v2071 = vpop.f32.mrf.mxu0
  %v2072 = vadd.f32 0.0, %v2071
  %v2073 = vpop.f32.mrf.mxu0
  %2074 = vmatprep.mubr.f32.mxu0 0.0
  %2075 = vmatmul.mubr.f32.gmra.mxu0 %v1995
  %v2076 = vpop.f32.mrf.mxu0
  %v2077 = vadd.f32 0.0, %v2076
  %v2078 = vpop.f32.mrf.mxu0
  %2079 = vdwg.mxu0
  %v2080 = vadd.f32 %v1900, %v2067
  %v2081 = vadd.f32 %v1901, %v2072
  %v2082 = vadd.f32 %v1902, %v2077
  %s2083 = scalar_lea.vmem %s6, 96
  %v2084 = vld [vmem:[%s2083] sm:$0xff]
  %v2085 = vld [vmem:[%s2083 + $0x8] sm:$0x1]
  %v2087 = vsel %vm1010, %v2085, 0
  %2089 = vmatprep.subr.mxu0 0.0
  %2090 = vmatpush1.msra.mxu0 0.0
  %2091 = vmatprep.subr.mxu0 0.0
  %2092 = vmatpush1.msra.mxu0 0.0
  %2093 = vmatprep.subr.mxu0 0.0
  %2094 = vmatpush1.msra.mxu0 0.0
  %2095 = vmatprep.subr.mxu0 0.0
  %2096 = vmatpush1.msra.mxu0 0.0
  %2097 = vmatprep.subr.mxu0 0.0
  %2098 = vmatpush1.msra.mxu0 0.0
  %2099 = vmatprep.subr.mxu0 0.0
  %2100 = vmatpush1.msra.mxu0 0.0
  %2101 = vmatprep.subr.mxu0 0.0
  %2102 = vmatpush1.msra.mxu0 0.0
  %2103 = vmatprep.subr.mxu0 0.0
  %2104 = vmatpush1.msra.mxu0 0.0
  %2105 = vmatprep.subr.mxu0 0.0
  %2106 = vmatpush1.msra.mxu0 0.0
  %2107 = vmatprep.subr.mxu0 0.0
  %2108 = vmatpush1.msra.mxu0 0.0
  %2109 = vmatprep.subr.mxu0 0.0
  %2110 = vmatpush1.msra.mxu0 0.0
  %2111 = vmatprep.subr.mxu0 0.0
  %2112 = vmatpush1.msra.mxu0 0.0
  %2113 = vmatprep.subr.mxu0 0.0
  %2114 = vmatpush1.msra.mxu0 0.0
  %2115 = vmatprep.subr.mxu0 0.0
  %2116 = vmatpush1.msra.mxu0 0.0
  %2117 = vmatprep.subr.mxu0 0.0
  %2118 = vmatpush1.msra.mxu0 %v2087
  %2119 = vmatprep.subr.mxu0 0.0
  %2120 = vmatpush1.msra.mxu0 %v2084
  %2121 = vmatprep.subr.mxu0 0.0
  %2122 = vmatpush2.msra.mxu0 0.0
  %2123 = vmatprep.subr.mxu0 0.0
  %2124 = vmatpush2.msra.mxu0 0.0
  %2125 = vmatprep.subr.mxu0 0.0
  %2126 = vmatpush2.msra.mxu0 0.0
  %2127 = vmatprep.subr.mxu0 0.0
  %2128 = vmatpush2.msra.mxu0 0.0
  %2129 = vmatprep.subr.mxu0 0.0
  %2130 = vmatpush2.msra.mxu0 0.0
  %2131 = vmatprep.subr.mxu0 0.0
  %2132 = vmatpush2.msra.mxu0 0.0
  %2133 = vmatprep.subr.mxu0 0.0
  %2134 = vmatpush2.msra.mxu0 0.0
  %2135 = vmatprep.subr.mxu0 0.0
  %2136 = vmatpush2.msra.mxu0 0.0
  %2137 = vmatprep.subr.mxu0 0.0
  %2138 = vmatpush2.msra.mxu0 0.0
  %2139 = vmatprep.subr.mxu0 0.0
  %2140 = vmatpush2.msra.mxu0 0.0
  %2141 = vmatprep.subr.mxu0 0.0
  %2142 = vmatpush2.msra.mxu0 0.0
  %2143 = vmatprep.subr.mxu0 0.0
  %2144 = vmatpush2.msra.mxu0 0.0
  %2145 = vmatprep.subr.mxu0 0.0
  %2146 = vmatpush2.msra.mxu0 0.0
  %2147 = vmatprep.subr.mxu0 0.0
  %2148 = vmatpush2.msra.mxu0 0.0
  %2149 = vmatprep.subr.mxu0 0.0
  %2150 = vmatpush2.msra.mxu0 0.0
  %2151 = vmatprep.subr.mxu0 0.0
  %2152 = vmatpush2.msra.mxu0 0.0
  %2153 = vmatprep.mubr.f32.mxu0 0.0
  %2154 = vmatmul.mubr.f32.gmra.mxu0 %v1005
  %v2155 = vpop.f32.mrf.mxu0
  %v2156 = vadd.f32 0.0, %v2155
  %v2157 = vpop.f32.mrf.mxu0
  %2158 = vmatprep.mubr.f32.mxu0 0.0
  %2159 = vmatmul.mubr.f32.gmra.mxu0 %v1008
  %v2160 = vpop.f32.mrf.mxu0
  %v2161 = vadd.f32 0.0, %v2160
  %v2162 = vpop.f32.mrf.mxu0
  %2163 = vdwg.mxu0
  %s2164 = scalar_lea.vmem %s7, 144
  %v2165 = vld [vmem:[%s2164] sm:$0xff]
  %v2166 = vld [vmem:[%s2164 + $0x8] sm:$0xff]
  %v2167 = vld [vmem:[%s2164 + $0x10] sm:$0xff]
  %v2169 = vsel %vm1177, %v2165, 0
  %v2172 = vsel %vm1177, %v2166, 0
  %v2175 = vsel %vm1177, %v2167, 0
  %v2178 = vsel %vm1187, %v2161, 0
  %2180 = vmatprep.subr.mxu0 0.0
  %2181 = vmatpush1.msra.mxu0 0.0
  %2182 = vmatprep.subr.mxu0 0.0
  %2183 = vmatpush1.msra.mxu0 0.0
  %2184 = vmatprep.subr.mxu0 0.0
  %2185 = vmatpush1.msra.mxu0 0.0
  %2186 = vmatprep.subr.mxu0 0.0
  %2187 = vmatpush1.msra.mxu0 0.0
  %2188 = vmatprep.subr.mxu0 0.0
  %2189 = vmatpush1.msra.mxu0 0.0
  %2190 = vmatprep.subr.mxu0 0.0
  %2191 = vmatpush1.msra.mxu0 0.0
  %2192 = vmatprep.subr.mxu0 0.0
  %2193 = vmatpush1.msra.mxu0 0.0
  %2194 = vmatprep.subr.mxu0 0.0
  %2195 = vmatpush1.msra.mxu0 0.0
  %2196 = vmatprep.subr.mxu0 0.0
  %2197 = vmatpush1.msra.mxu0 0.0
  %2198 = vmatprep.subr.mxu0 0.0
  %2199 = vmatpush1.msra.mxu0 0.0
  %2200 = vmatprep.subr.mxu0 0.0
  %2201 = vmatpush1.msra.mxu0 0.0
  %2202 = vmatprep.subr.mxu0 0.0
  %2203 = vmatpush1.msra.mxu0 0.0
  %2204 = vmatprep.subr.mxu0 0.0
  %2205 = vmatpush1.msra.mxu0 0.0
  %2206 = vmatprep.subr.mxu0 0.0
  %2207 = vmatpush1.msra.mxu0 0.0
  %2208 = vmatprep.subr.mxu0 0.0
  %2209 = vmatpush1.msra.mxu0 %v2178
  %2210 = vmatprep.subr.mxu0 0.0
  %2211 = vmatpush1.msra.mxu0 %v2156
  %2212 = vmatprep.subr.mxu0 0.0
  %2213 = vmatpush2.msra.mxu0 0.0
  %2214 = vmatprep.subr.mxu0 0.0
  %2215 = vmatpush2.msra.mxu0 0.0
  %2216 = vmatprep.subr.mxu0 0.0
  %2217 = vmatpush2.msra.mxu0 0.0
  %2218 = vmatprep.subr.mxu0 0.0
  %2219 = vmatpush2.msra.mxu0 0.0
  %2220 = vmatprep.subr.mxu0 0.0
  %2221 = vmatpush2.msra.mxu0 0.0
  %2222 = vmatprep.subr.mxu0 0.0
  %2223 = vmatpush2.msra.mxu0 0.0
  %2224 = vmatprep.subr.mxu0 0.0
  %2225 = vmatpush2.msra.mxu0 0.0
  %2226 = vmatprep.subr.mxu0 0.0
  %2227 = vmatpush2.msra.mxu0 0.0
  %2228 = vmatprep.subr.mxu0 0.0
  %2229 = vmatpush2.msra.mxu0 0.0
  %2230 = vmatprep.subr.mxu0 0.0
  %2231 = vmatpush2.msra.mxu0 0.0
  %2232 = vmatprep.subr.mxu0 0.0
  %2233 = vmatpush2.msra.mxu0 0.0
  %2234 = vmatprep.subr.mxu0 0.0
  %2235 = vmatpush2.msra.mxu0 0.0
  %2236 = vmatprep.subr.mxu0 0.0
  %2237 = vmatpush2.msra.mxu0 0.0
  %2238 = vmatprep.subr.mxu0 0.0
  %2239 = vmatpush2.msra.mxu0 0.0
  %2240 = vmatprep.subr.mxu0 0.0
  %2241 = vmatpush2.msra.mxu0 0.0
  %2242 = vmatprep.subr.mxu0 0.0
  %2243 = vmatpush2.msra.mxu0 0.0
  %2244 = vmatprep.mubr.f32.mxu0 0.0
  %2245 = vmatmul.mubr.f32.gmra.mxu0 %v2169
  %v2246 = vpop.f32.mrf.mxu0
  %v2247 = vadd.f32 0.0, %v2246
  %v2248 = vpop.f32.mrf.mxu0
  %2249 = vmatprep.mubr.f32.mxu0 0.0
  %2250 = vmatmul.mubr.f32.gmra.mxu0 %v2172
  %v2251 = vpop.f32.mrf.mxu0
  %v2252 = vadd.f32 0.0, %v2251
  %v2253 = vpop.f32.mrf.mxu0
  %2254 = vmatprep.mubr.f32.mxu0 0.0
  %2255 = vmatmul.mubr.f32.gmra.mxu0 %v2175
  %v2256 = vpop.f32.mrf.mxu0
  %v2257 = vadd.f32 0.0, %v2256
  %v2258 = vpop.f32.mrf.mxu0
  %2259 = vdwg.mxu0
  %v2260 = vadd.f32 %v2080, %v2247
  %v2261 = vadd.f32 %v2081, %v2252
  %v2262 = vadd.f32 %v2082, %v2257
  %s2263 = scalar_lea.vmem %s6, 112
  %v2264 = vld [vmem:[%s2263] sm:$0xff]
  %v2265 = vld [vmem:[%s2263 + $0x8] sm:$0x1]
  %v2267 = vsel %vm1010, %v2265, 0
  %2269 = vmatprep.subr.mxu0 0.0
  %2270 = vmatpush1.msra.mxu0 0.0
  %2271 = vmatprep.subr.mxu0 0.0
  %2272 = vmatpush1.msra.mxu0 0.0
  %2273 = vmatprep.subr.mxu0 0.0
  %2274 = vmatpush1.msra.mxu0 0.0
  %2275 = vmatprep.subr.mxu0 0.0
  %2276 = vmatpush1.msra.mxu0 0.0
  %2277 = vmatprep.subr.mxu0 0.0
  %2278 = vmatpush1.msra.mxu0 0.0
  %2279 = vmatprep.subr.mxu0 0.0
  %2280 = vmatpush1.msra.mxu0 0.0
  %2281 = vmatprep.subr.mxu0 0.0
  %2282 = vmatpush1.msra.mxu0 0.0
  %2283 = vmatprep.subr.mxu0 0.0
  %2284 = vmatpush1.msra.mxu0 0.0
  %2285 = vmatprep.subr.mxu0 0.0
  %2286 = vmatpush1.msra.mxu0 0.0
  %2287 = vmatprep.subr.mxu0 0.0
  %2288 = vmatpush1.msra.mxu0 0.0
  %2289 = vmatprep.subr.mxu0 0.0
  %2290 = vmatpush1.msra.mxu0 0.0
  %2291 = vmatprep.subr.mxu0 0.0
  %2292 = vmatpush1.msra.mxu0 0.0
  %2293 = vmatprep.subr.mxu0 0.0
  %2294 = vmatpush1.msra.mxu0 0.0
  %2295 = vmatprep.subr.mxu0 0.0
  %2296 = vmatpush1.msra.mxu0 0.0
  %2297 = vmatprep.subr.mxu0 0.0
  %2298 = vmatpush1.msra.mxu0 %v2267
  %2299 = vmatprep.subr.mxu0 0.0
  %2300 = vmatpush1.msra.mxu0 %v2264
  %2301 = vmatprep.subr.mxu0 0.0
  %2302 = vmatpush2.msra.mxu0 0.0
  %2303 = vmatprep.subr.mxu0 0.0
  %2304 = vmatpush2.msra.mxu0 0.0
  %2305 = vmatprep.subr.mxu0 0.0
  %2306 = vmatpush2.msra.mxu0 0.0
  %2307 = vmatprep.subr.mxu0 0.0
  %2308 = vmatpush2.msra.mxu0 0.0
  %2309 = vmatprep.subr.mxu0 0.0
  %2310 = vmatpush2.msra.mxu0 0.0
  %2311 = vmatprep.subr.mxu0 0.0
  %2312 = vmatpush2.msra.mxu0 0.0
  %2313 = vmatprep.subr.mxu0 0.0
  %2314 = vmatpush2.msra.mxu0 0.0
  %2315 = vmatprep.subr.mxu0 0.0
  %2316 = vmatpush2.msra.mxu0 0.0
  %2317 = vmatprep.subr.mxu0 0.0
  %2318 = vmatpush2.msra.mxu0 0.0
  %2319 = vmatprep.subr.mxu0 0.0
  %2320 = vmatpush2.msra.mxu0 0.0
  %2321 = vmatprep.subr.mxu0 0.0
  %2322 = vmatpush2.msra.mxu0 0.0
  %2323 = vmatprep.subr.mxu0 0.0
  %2324 = vmatpush2.msra.mxu0 0.0
  %2325 = vmatprep.subr.mxu0 0.0
  %2326 = vmatpush2.msra.mxu0 0.0
  %2327 = vmatprep.subr.mxu0 0.0
  %2328 = vmatpush2.msra.mxu0 0.0
  %2329 = vmatprep.subr.mxu0 0.0
  %2330 = vmatpush2.msra.mxu0 0.0
  %2331 = vmatprep.subr.mxu0 0.0
  %2332 = vmatpush2.msra.mxu0 0.0
  %2333 = vmatprep.mubr.f32.mxu0 0.0
  %2334 = vmatmul.mubr.f32.gmra.mxu0 %v1005
  %v2335 = vpop.f32.mrf.mxu0
  %v2336 = vadd.f32 0.0, %v2335
  %v2337 = vpop.f32.mrf.mxu0
  %2338 = vmatprep.mubr.f32.mxu0 0.0
  %2339 = vmatmul.mubr.f32.gmra.mxu0 %v1008
  %v2340 = vpop.f32.mrf.mxu0
  %v2341 = vadd.f32 0.0, %v2340
  %v2342 = vpop.f32.mrf.mxu0
  %2343 = vdwg.mxu0
  %s2344 = scalar_lea.vmem %s7, 168
  %v2345 = vld [vmem:[%s2344] sm:$0xff]
  %v2346 = vld [vmem:[%s2344 + $0x8] sm:$0xff]
  %v2347 = vld [vmem:[%s2344 + $0x10] sm:$0xff]
  %v2349 = vsel %vm1177, %v2345, 0
  %v2352 = vsel %vm1177, %v2346, 0
  %v2355 = vsel %vm1177, %v2347, 0
  %v2358 = vsel %vm1187, %v2341, 0
  %2360 = vmatprep.subr.mxu0 0.0
  %2361 = vmatpush1.msra.mxu0 0.0
  %2362 = vmatprep.subr.mxu0 0.0
  %2363 = vmatpush1.msra.mxu0 0.0
  %2364 = vmatprep.subr.mxu0 0.0
  %2365 = vmatpush1.msra.mxu0 0.0
  %2366 = vmatprep.subr.mxu0 0.0
  %2367 = vmatpush1.msra.mxu0 0.0
  %2368 = vmatprep.subr.mxu0 0.0
  %2369 = vmatpush1.msra.mxu0 0.0
  %2370 = vmatprep.subr.mxu0 0.0
  %2371 = vmatpush1.msra.mxu0 0.0
  %2372 = vmatprep.subr.mxu0 0.0
  %2373 = vmatpush1.msra.mxu0 0.0
  %2374 = vmatprep.subr.mxu0 0.0
  %2375 = vmatpush1.msra.mxu0 0.0
  %2376 = vmatprep.subr.mxu0 0.0
  %2377 = vmatpush1.msra.mxu0 0.0
  %2378 = vmatprep.subr.mxu0 0.0
  %2379 = vmatpush1.msra.mxu0 0.0
  %2380 = vmatprep.subr.mxu0 0.0
  %2381 = vmatpush1.msra.mxu0 0.0
  %2382 = vmatprep.subr.mxu0 0.0
  %2383 = vmatpush1.msra.mxu0 0.0
  %2384 = vmatprep.subr.mxu0 0.0
  %2385 = vmatpush1.msra.mxu0 0.0
  %2386 = vmatprep.subr.mxu0 0.0
  %2387 = vmatpush1.msra.mxu0 0.0
  %2388 = vmatprep.subr.mxu0 0.0
  %2389 = vmatpush1.msra.mxu0 %v2358
  %2390 = vmatprep.subr.mxu0 0.0
  %2391 = vmatpush1.msra.mxu0 %v2336
  %2392 = vmatprep.subr.mxu0 0.0
  %2393 = vmatpush2.msra.mxu0 0.0
  %2394 = vmatprep.subr.mxu0 0.0
  %2395 = vmatpush2.msra.mxu0 0.0
  %2396 = vmatprep.subr.mxu0 0.0
  %2397 = vmatpush2.msra.mxu0 0.0
  %2398 = vmatprep.subr.mxu0 0.0
  %2399 = vmatpush2.msra.mxu0 0.0
  %2400 = vmatprep.subr.mxu0 0.0
  %2401 = vmatpush2.msra.mxu0 0.0
  %2402 = vmatprep.subr.mxu0 0.0
  %2403 = vmatpush2.msra.mxu0 0.0
  %2404 = vmatprep.subr.mxu0 0.0
  %2405 = vmatpush2.msra.mxu0 0.0
  %2406 = vmatprep.subr.mxu0 0.0
  %2407 = vmatpush2.msra.mxu0 0.0
  %2408 = vmatprep.subr.mxu0 0.0
  %2409 = vmatpush2.msra.mxu0 0.0
  %2410 = vmatprep.subr.mxu0 0.0
  %2411 = vmatpush2.msra.mxu0 0.0
  %2412 = vmatprep.subr.mxu0 0.0
  %2413 = vmatpush2.msra.mxu0 0.0
  %2414 = vmatprep.subr.mxu0 0.0
  %2415 = vmatpush2.msra.mxu0 0.0
  %2416 = vmatprep.subr.mxu0 0.0
  %2417 = vmatpush2.msra.mxu0 0.0
  %2418 = vmatprep.subr.mxu0 0.0
  %2419 = vmatpush2.msra.mxu0 0.0
  %2420 = vmatprep.subr.mxu0 0.0
  %2421 = vmatpush2.msra.mxu0 0.0
  %2422 = vmatprep.subr.mxu0 0.0
  %2423 = vmatpush2.msra.mxu0 0.0
  %2424 = vmatprep.mubr.f32.mxu0 0.0
  %2425 = vmatmul.mubr.f32.gmra.mxu0 %v2349
  %v2426 = vpop.f32.mrf.mxu0
  %v2427 = vadd.f32 0.0, %v2426
  %v2428 = vpop.f32.mrf.mxu0
  %2429 = vmatprep.mubr.f32.mxu0 0.0
  %2430 = vmatmul.mubr.f32.gmra.mxu0 %v2352
  %v2431 = vpop.f32.mrf.mxu0
  %v2432 = vadd.f32 0.0, %v2431
  %v2433 = vpop.f32.mrf.mxu0
  %2434 = vmatprep.mubr.f32.mxu0 0.0
  %2435 = vmatmul.mubr.f32.gmra.mxu0 %v2355
  %v2436 = vpop.f32.mrf.mxu0
  %v2437 = vadd.f32 0.0, %v2436
  %v2438 = vpop.f32.mrf.mxu0
  %2439 = vdwg.mxu0
  %v2440 = vadd.f32 %v2260, %v2427
  %v2441 = vadd.f32 %v2261, %v2432
  %v2442 = vadd.f32 %v2262, %v2437
  %s2443 = scalar_lea.vmem %s6, 128
  %v2444 = vld [vmem:[%s2443] sm:$0xff]
  %v2445 = vld [vmem:[%s2443 + $0x8] sm:$0x1]
  %v2447 = vsel %vm1010, %v2445, 0
  %2449 = vmatprep.subr.mxu0 0.0
  %2450 = vmatpush1.msra.mxu0 0.0
  %2451 = vmatprep.subr.mxu0 0.0
  %2452 = vmatpush1.msra.mxu0 0.0
  %2453 = vmatprep.subr.mxu0 0.0
  %2454 = vmatpush1.msra.mxu0 0.0
  %2455 = vmatprep.subr.mxu0 0.0
  %2456 = vmatpush1.msra.mxu0 0.0
  %2457 = vmatprep.subr.mxu0 0.0
  %2458 = vmatpush1.msra.mxu0 0.0
  %2459 = vmatprep.subr.mxu0 0.0
  %2460 = vmatpush1.msra.mxu0 0.0
  %2461 = vmatprep.subr.mxu0 0.0
  %2462 = vmatpush1.msra.mxu0 0.0
  %2463 = vmatprep.subr.mxu0 0.0
  %2464 = vmatpush1.msra.mxu0 0.0
  %2465 = vmatprep.subr.mxu0 0.0
  %2466 = vmatpush1.msra.mxu0 0.0
  %2467 = vmatprep.subr.mxu0 0.0
  %2468 = vmatpush1.msra.mxu0 0.0
  %2469 = vmatprep.subr.mxu0 0.0
  %2470 = vmatpush1.msra.mxu0 0.0
  %2471 = vmatprep.subr.mxu0 0.0
  %2472 = vmatpush1.msra.mxu0 0.0
  %2473 = vmatprep.subr.mxu0 0.0
  %2474 = vmatpush1.msra.mxu0 0.0
  %2475 = vmatprep.subr.mxu0 0.0
  %2476 = vmatpush1.msra.mxu0 0.0
  %2477 = vmatprep.subr.mxu0 0.0
  %2478 = vmatpush1.msra.mxu0 %v2447
  %2479 = vmatprep.subr.mxu0 0.0
  %2480 = vmatpush1.msra.mxu0 %v2444
  %2481 = vmatprep.subr.mxu0 0.0
  %2482 = vmatpush2.msra.mxu0 0.0
  %2483 = vmatprep.subr.mxu0 0.0
  %2484 = vmatpush2.msra.mxu0 0.0
  %2485 = vmatprep.subr.mxu0 0.0
  %2486 = vmatpush2.msra.mxu0 0.0
  %2487 = vmatprep.subr.mxu0 0.0
  %2488 = vmatpush2.msra.mxu0 0.0
  %2489 = vmatprep.subr.mxu0 0.0
  %2490 = vmatpush2.msra.mxu0 0.0
  %2491 = vmatprep.subr.mxu0 0.0
  %2492 = vmatpush2.msra.mxu0 0.0
  %2493 = vmatprep.subr.mxu0 0.0
  %2494 = vmatpush2.msra.mxu0 0.0
  %2495 = vmatprep.subr.mxu0 0.0
  %2496 = vmatpush2.msra.mxu0 0.0
  %2497 = vmatprep.subr.mxu0 0.0
  %2498 = vmatpush2.msra.mxu0 0.0
  %2499 = vmatprep.subr.mxu0 0.0
  %2500 = vmatpush2.msra.mxu0 0.0
  %2501 = vmatprep.subr.mxu0 0.0
  %2502 = vmatpush2.msra.mxu0 0.0
  %2503 = vmatprep.subr.mxu0 0.0
  %2504 = vmatpush2.msra.mxu0 0.0
  %2505 = vmatprep.subr.mxu0 0.0
  %2506 = vmatpush2.msra.mxu0 0.0
  %2507 = vmatprep.subr.mxu0 0.0
  %2508 = vmatpush2.msra.mxu0 0.0
  %2509 = vmatprep.subr.mxu0 0.0
  %2510 = vmatpush2.msra.mxu0 0.0
  %2511 = vmatprep.subr.mxu0 0.0
  %2512 = vmatpush2.msra.mxu0 0.0
  %2513 = vmatprep.mubr.f32.mxu0 0.0
  %2514 = vmatmul.mubr.f32.gmra.mxu0 %v1005
  %v2515 = vpop.f32.mrf.mxu0
  %v2516 = vadd.f32 0.0, %v2515
  %v2517 = vpop.f32.mrf.mxu0
  %2518 = vmatprep.mubr.f32.mxu0 0.0
  %2519 = vmatmul.mubr.f32.gmra.mxu0 %v1008
  %v2520 = vpop.f32.mrf.mxu0
  %v2521 = vadd.f32 0.0, %v2520
  %v2522 = vpop.f32.mrf.mxu0
  %2523 = vdwg.mxu0
  %s2524 = scalar_lea.vmem %s7, 192
  %v2525 = vld [vmem:[%s2524] sm:$0xff]
  %v2526 = vld [vmem:[%s2524 + $0x8] sm:$0xff]
  %v2527 = vld [vmem:[%s2524 + $0x10] sm:$0xff]
  %v2529 = vsel %vm1177, %v2525, 0
  %v2532 = vsel %vm1177, %v2526, 0
  %v2535 = vsel %vm1177, %v2527, 0
  %v2538 = vsel %vm1187, %v2521, 0
  %2540 = vmatprep.subr.mxu0 0.0
  %2541 = vmatpush1.msra.mxu0 0.0
  %2542 = vmatprep.subr.mxu0 0.0
  %2543 = vmatpush1.msra.mxu0 0.0
  %2544 = vmatprep.subr.mxu0 0.0
  %2545 = vmatpush1.msra.mxu0 0.0
  %2546 = vmatprep.subr.mxu0 0.0
  %2547 = vmatpush1.msra.mxu0 0.0
  %2548 = vmatprep.subr.mxu0 0.0
  %2549 = vmatpush1.msra.mxu0 0.0
  %2550 = vmatprep.subr.mxu0 0.0
  %2551 = vmatpush1.msra.mxu0 0.0
  %2552 = vmatprep.subr.mxu0 0.0
  %2553 = vmatpush1.msra.mxu0 0.0
  %2554 = vmatprep.subr.mxu0 0.0
  %2555 = vmatpush1.msra.mxu0 0.0
  %2556 = vmatprep.subr.mxu0 0.0
  %2557 = vmatpush1.msra.mxu0 0.0
  %2558 = vmatprep.subr.mxu0 0.0
  %2559 = vmatpush1.msra.mxu0 0.0
  %2560 = vmatprep.subr.mxu0 0.0
  %2561 = vmatpush1.msra.mxu0 0.0
  %2562 = vmatprep.subr.mxu0 0.0
  %2563 = vmatpush1.msra.mxu0 0.0
  %2564 = vmatprep.subr.mxu0 0.0
  %2565 = vmatpush1.msra.mxu0 0.0
  %2566 = vmatprep.subr.mxu0 0.0
  %2567 = vmatpush1.msra.mxu0 0.0
  %2568 = vmatprep.subr.mxu0 0.0
  %2569 = vmatpush1.msra.mxu0 %v2538
  %2570 = vmatprep.subr.mxu0 0.0
  %2571 = vmatpush1.msra.mxu0 %v2516
  %2572 = vmatprep.subr.mxu0 0.0
  %2573 = vmatpush2.msra.mxu0 0.0
  %2574 = vmatprep.subr.mxu0 0.0
  %2575 = vmatpush2.msra.mxu0 0.0
  %2576 = vmatprep.subr.mxu0 0.0
  %2577 = vmatpush2.msra.mxu0 0.0
  %2578 = vmatprep.subr.mxu0 0.0
  %2579 = vmatpush2.msra.mxu0 0.0
  %2580 = vmatprep.subr.mxu0 0.0
  %2581 = vmatpush2.msra.mxu0 0.0
  %2582 = vmatprep.subr.mxu0 0.0
  %2583 = vmatpush2.msra.mxu0 0.0
  %2584 = vmatprep.subr.mxu0 0.0
  %2585 = vmatpush2.msra.mxu0 0.0
  %2586 = vmatprep.subr.mxu0 0.0
  %2587 = vmatpush2.msra.mxu0 0.0
  %2588 = vmatprep.subr.mxu0 0.0
  %2589 = vmatpush2.msra.mxu0 0.0
  %2590 = vmatprep.subr.mxu0 0.0
  %2591 = vmatpush2.msra.mxu0 0.0
  %2592 = vmatprep.subr.mxu0 0.0
  %2593 = vmatpush2.msra.mxu0 0.0
  %2594 = vmatprep.subr.mxu0 0.0
  %2595 = vmatpush2.msra.mxu0 0.0
  %2596 = vmatprep.subr.mxu0 0.0
  %2597 = vmatpush2.msra.mxu0 0.0
  %2598 = vmatprep.subr.mxu0 0.0
  %2599 = vmatpush2.msra.mxu0 0.0
  %2600 = vmatprep.subr.mxu0 0.0
  %2601 = vmatpush2.msra.mxu0 0.0
  %2602 = vmatprep.subr.mxu0 0.0
  %2603 = vmatpush2.msra.mxu0 0.0
  %2604 = vmatprep.mubr.f32.mxu0 0.0
  %2605 = vmatmul.mubr.f32.gmra.mxu0 %v2529
  %v2606 = vpop.f32.mrf.mxu0
  %v2607 = vadd.f32 0.0, %v2606
  %v2608 = vpop.f32.mrf.mxu0
  %2609 = vmatprep.mubr.f32.mxu0 0.0
  %2610 = vmatmul.mubr.f32.gmra.mxu0 %v2532
  %v2611 = vpop.f32.mrf.mxu0
  %v2612 = vadd.f32 0.0, %v2611
  %v2613 = vpop.f32.mrf.mxu0
  %2614 = vmatprep.mubr.f32.mxu0 0.0
  %2615 = vmatmul.mubr.f32.gmra.mxu0 %v2535
  %v2616 = vpop.f32.mrf.mxu0
  %v2617 = vadd.f32 0.0, %v2616
  %v2618 = vpop.f32.mrf.mxu0
  %2619 = vdwg.mxu0
  %v2620 = vadd.f32 %v2440, %v2607
  %v2621 = vadd.f32 %v2441, %v2612
  %v2622 = vadd.f32 %v2442, %v2617
  %v2623 = vld [vmem:[%s8] sm:$0xff]
  %v2624 = vld [vmem:[%s8 + $0x8] sm:$0xff]
  %v2625 = vld [vmem:[%s8 + $0x10] sm:$0xff]
  %2627 = vset.pattern.permute.xlu0 0
  %2628 = vperm.xlu0 %2627, %v2623
  %v2629 = vpop.permute.xlu0 %2628
  %2632 = vset.pattern.permute.xlu0 0
  %2633 = vperm.xlu0 %2632, %v2624
  %v2634 = vpop.permute.xlu0 %2633
  %2637 = vset.pattern.permute.xlu0 0
  %2638 = vperm.xlu0 %2637, %v2625
  %v2639 = vpop.permute.xlu0 %2638
  %v2641 = vadd.f32 %v2620, %v2629
  %v2642 = vadd.f32 %v2621, %v2634
  %v2643 = vadd.f32 %v2622, %v2639
  %v2644 = vsub.f32 0.0, %v2641
  %v2645 = vsub.f32 0.0, %v2642
  %v2646 = vsub.f32 0.0, %v2643
  %v2647 = vmul.f32 %v2644, 1.442695
  %v2648 = vpow.pop %v2647
  %v2649 = vmul.f32 %v2645, 1.442695
  %v2650 = vpow.pop %v2649
  %v2651 = vmul.f32 %v2646, 1.442695
  %v2652 = vpow.pop %v2651
  %v2653 = vadd.f32 %v2648, 1.0
  %v2654 = vadd.f32 %v2650, 1.0
  %v2655 = vadd.f32 %v2652, 1.0
  %v2656 = vrcp.pop %v2653
  %v2657 = vmul.f32 1.0, %v2656
  %v2658 = vrcp.pop %v2654
  %v2659 = vmul.f32 1.0, %v2658
  %v2660 = vrcp.pop %v2655
  %v2661 = vmul.f32 1.0, %v2660
  %2662 = vst.msk [vmem:[%s9] sm:$0xff] %vm1003, %v2657
  %2663 = vst.msk [vmem:[%s9 + $0x8] sm:$0xff] %vm1003, %v2659
  %2664 = vst.msk [vmem:[%s9 + $0x10] sm:$0xff] %vm1003, %v2661
  // Predicated region
  $region38: #{model_forward.1} parent=0 // pred_check
    _
  $region39: #{model_forward.1} parent=0 // pred_check_branch
    %2666 = sbr.rel (0) target = $region41
  $region40: #{model_forward.1} parent=0 // pred_region
    _
  $region41: #{model_forward.1} parent=0 // pred_fallthru
    _
  // Predicated region
  $region42: #{model_forward.1} parent=0 // pred_check
    _
  $region43: #{model_forward.1} parent=0 // pred_check_branch
    %2668 = sbr.rel (0) target = $region45
  $region44: #{model_forward.1} parent=0 // pred_region
    _
  $region45: #{model_forward.1} parent=0 // pred_fallthru
    _

</llo_original>
